<compile_context>
chip_gen: v7x
topology: tpu7x:2x2x1
jax: 0.10.0
libtpu: 0.0.40
codegen_flags: <defaults>
</compile_context>

<pallas_src>
import functools

import numpy as np
import jax
import jax.numpy as jnp
from jax.experimental import pallas as pl
from jax.experimental.pallas import tpu as pltpu

LOG10_SCALE = np.float32(10.0 / np.log(10.0))


def _round_up(x, m):
    return ((x + m - 1) // m) * m


# ----------------------------------------------------------------------------
# deterministic parameter construction (mirrors STFT.__init__ / mel filterbank)
# ----------------------------------------------------------------------------
def make_fourier_bases(filter_length):
    """Real / imag DFT bases, (F, C) each, so that frames @ basis -> (rows, C)."""
    cutoff = filter_length // 2 + 1
    fourier_basis = np.fft.fft(np.eye(filter_length))
    real_b = np.real(fourier_basis[:cutoff, :]).astype(np.float32).T.copy()  # (F, C)
    imag_b = np.imag(fourier_basis[:cutoff, :]).astype(np.float32).T.copy()  # (F, C)
    return real_b, imag_b


def make_mel_filterbank(sample_rate, filter_length, num_mels):
    """Deterministic triangular mel filterbank, shape (num_mels, cutoff).
    # TODO(synk): librosa.filters.mel uses the Slaney scale + area normalization;
    # this deterministic HTK-style triangle bank stands in for it (same shapes)."""
    n_freqs = filter_length // 2 + 1
    hz_to_mel = lambda f: 2595.0 * np.log10(1.0 + f / 700.0)
    mel_to_hz = lambda m: 700.0 * (10.0 ** (m / 2595.0) - 1.0)
    mel_pts = np.linspace(hz_to_mel(0.0), hz_to_mel(sample_rate / 2.0), num_mels + 2)
    hz_pts = mel_to_hz(mel_pts)
    bins = np.linspace(0.0, sample_rate / 2.0, n_freqs)
    fb = np.zeros((num_mels, n_freqs), dtype=np.float32)
    for m in range(1, num_mels + 1):
        lo, ctr, hi = hz_pts[m - 1], hz_pts[m], hz_pts[m + 1]
        up = (bins - lo) / max(ctr - lo, 1e-8)
        down = (hi - bins) / max(hi - ctr, 1e-8)
        fb[m - 1] = np.maximum(0.0, np.minimum(up, down))
    return fb  # (num_mels, cutoff)


def make_padded_operands(sample_rate, filter_length, num_mels):
    """Fused, lane-padded MXU operands.

    Returns:
      fused_basis : (F, 2*C_pad) f32 — [real | imag] DFT bases, zero-padded cols.
      mel_t       : (C_pad, M_pad) f32 — mel_fb.T zero-padded to 128 multiples.
    """
    C = filter_length // 2 + 1
    c_pad = _round_up(C, 128)
    m_pad = _round_up(num_mels, 128)
    real_b, imag_b = make_fourier_bases(filter_length)
    fused = np.zeros((filter_length, 2 * c_pad), dtype=np.float32)
    fused[:, :C] = real_b
    fused[:, c_pad:c_pad + C] = imag_b
    mel_fb = make_mel_filterbank(sample_rate, filter_length, num_mels)  # (M, C)
    mel_t = np.zeros((c_pad, m_pad), dtype=np.float32)
    mel_t[:C, :num_mels] = mel_fb.T
    return fused, mel_t


# ----------------------------------------------------------------------------
# Pallas kernel: hop-shifted block tiles -> STFT magnitude -> mel -> 10*log10(.^2)
# ----------------------------------------------------------------------------
def mel_kernel(*refs, ratio, hop, c_pad):
    # refs layout: (audio_view_0 .. audio_view_{ratio-1}, basis, mel_t, out)
    #   audio_view_r : (tile_t, hop)   hop-block r of every frame in this tile
    #   basis_ref    : (F, 2*c_pad)    fused [real | imag] DFT basis (resident)
    #   mel_t_ref    : (c_pad, m_pad)  mel filters^T, zero-padded (resident)
    #   out_ref      : (tile_t, m_pad) lane-dense output tile
    audio_refs = refs[:ratio]
    basis_ref, mel_t_ref, out_ref = refs[ratio], refs[ratio + 1], refs[ratio + 2]

    # frame_t = [view_0[t] | view_1[t] | ... | view_{ratio-1}[t]]  ==>
    # frames @ basis == sum_r  view_r @ basis[r*hop:(r+1)*hop, :]
    # ratio accumulating K=hop matmuls; no lane-offset concat intermediate.
    ft = jnp.dot(audio_refs[0][...], basis_ref[0:hop, :],
                 preferred_element_type=jnp.float32)               # (tile_t, 2*c_pad)
    for r in range(1, ratio):
        ft = ft + jnp.dot(audio_refs[r][...],
                          basis_ref[r * hop:(r + 1) * hop, :],
                          preferred_element_type=jnp.float32)

    re = ft[:, :c_pad]                                             # lane-aligned split
    im = ft[:, c_pad:]
    mag = jnp.sqrt(re * re + im * im)                              # (tile_t, c_pad)
    mel = jnp.dot(mag, mel_t_ref[...],
                  preferred_element_type=jnp.float32)              # (tile_t, m_pad)
    out_ref[...] = LOG10_SCALE * jnp.log(mel * mel + jnp.float32(1e-8))


def mel_spectrogram_pallas(x, fused_basis, mel_t, filter_length, hop_length,
                           num_mels, tile_t=512):
    """x: (B, N) float32 waveform.  Returns (B, T, num_mels) float32 with
    T = (N + filter_length) // hop_length + 1 (the conv1d output length)."""
    B, N = x.shape
    F = filter_length
    hop = hop_length
    assert F % hop == 0, "in-kernel framing requires filter_length % hop_length == 0"
    ratio = F // hop
    c_pad = fused_basis.shape[1] // 2
    m_pad = mel_t.shape[1]

    T = (N + F) // hop + 1                        # == PyTorch conv1d output length
    tile_t = _round_up(min(tile_t, _round_up(T, 8)), 8)
    ntiles = -(-T // tile_t)
    T_pad = ntiles * tile_t

    # conv1d pads F zeros on each side; extend the tail so every hop-shifted view
    # below covers T_pad hop-blocks (extra frames are all-zero and cropped later).
    total_len = (T_pad + ratio - 1) * hop
    pad_tail = max(total_len - (N + F), 0)
    x_pad = jnp.pad(x, ((0, 0), (F, pad_tail)))

    # ratio hop-shifted hop-block views: view r, block t = padded samples
    # [(t + r) * hop, (t + r + 1) * hop)   =>   frame t = concat_r(view_r[t]).
    views = [x_pad[:, r * hop: r * hop + T_pad * hop].reshape(B, T_pad, hop)
             for r in range(ratio)]

    fused_basis = jnp.asarray(fused_basis)
    mel_t = jnp.asarray(mel_t)

    kernel = functools.partial(mel_kernel, ratio=ratio, hop=hop, c_pad=c_pad)

    audio_specs = [pl.BlockSpec((None, tile_t, hop), lambda b, j: (b, j, 0))
                   for _ in range(ratio)]

    out = pl.pallas_call(
        kernel,
        out_shape=jax.ShapeDtypeStruct((B, T_pad, m_pad), jnp.float32),
        grid_spec=pltpu.PrefetchScalarGridSpec(
            num_scalar_prefetch=0,
            grid=(B, ntiles),
            in_specs=audio_specs + [
                pl.BlockSpec((F, 2 * c_pad), lambda b, j: (0, 0)),  # fused DFT basis
                pl.BlockSpec((c_pad, m_pad), lambda b, j: (0, 0)),  # mel filters^T
            ],
            out_specs=pl.BlockSpec((None, tile_t, m_pad), lambda b, j: (b, j, 0)),
        ),
        compiler_params=pltpu.CompilerParams(
            dimension_semantics=("parallel", "parallel")),
    )(*views, fused_basis, mel_t)

    return out[:, :T, :num_mels]


# ----------------------------------------------------------------------------
# pure-JAX reference (mirrors the PyTorch forward exactly, independent framing)
# ----------------------------------------------------------------------------
def mel_spectrogram_ref(x, filter_length, hop_length, sample_rate, num_mels):
    B, N = x.shape
    F = filter_length
    real_b, imag_b = make_fourier_bases(F)                      # (F, C)
    mel_fb = make_mel_filterbank(sample_rate, F, num_mels)      # (M, C)
    x_pad = jnp.pad(x, ((0, 0), (F, F)))
    T = (N + F) // hop_length + 1
    idx = (np.arange(T)[:, None] * hop_length) + np.arange(F)[None, :]
    frames = x_pad[:, idx]                                      # (B, T, F)
    hi = jax.lax.Precision.HIGHEST
    re = jnp.einsum('btf,fc->btc', frames, jnp.asarray(real_b), precision=hi)
    im = jnp.einsum('btf,fc->btc', frames, jnp.asarray(imag_b), precision=hi)
    mag = jnp.sqrt(re * re + im * im)
    mel = jnp.einsum('btc,mc->btm', mag, jnp.asarray(mel_fb), precision=hi)
    return 10.0 * (jnp.log(mel * mel + 1e-8) / np.log(10.0))


if __name__ == "__main__":
    # module defaults at a small input size: 0.1 s of 16 kHz audio, batch of 2
    sample_rate = 16000
    filter_length = 480
    hop_length = 160
    num_mels = 80
    B, N = 2, 1600

    fused_basis, mel_t = make_padded_operands(sample_rate, filter_length, num_mels)

    key = jax.random.PRNGKey(0)
    x = jax.random.normal(key, (B, N), dtype=jnp.float32)

    out = mel_spectrogram_pallas(x, fused_basis, mel_t,
                                 filter_length, hop_length, num_mels)
    out = jax.block_until_ready(out)

    ref = jax.block_until_ready(
        mel_spectrogram_ref(x, filter_length, hop_length, sample_rate, num_mels))

    T = (N + filter_length) // hop_length + 1
    assert out.shape == ref.shape == (B, T, num_mels), (out.shape, ref.shape)
    # Outputs are in dB: 0.02 dB absolute slack absorbs MXU multi-pass rounding
    # differences vs the HIGHEST-precision einsum reference (summation order of
    # the split-K accumulation also differs); structural bugs show up as
    # multi-dB errors and still fail this check.
    np.testing.assert_allclose(np.asarray(out), np.asarray(ref),
                               rtol=2e-3, atol=2e-2)
    print("KERNEL_OK")
</pallas_src>

<mosaic_0001>
module attributes {stable_mosaic.version = 11 : i64} {
  func.func @mel_kernel(%arg0: i32, %arg1: i32, %arg2: memref<1x16x160xf32, #tpu.memory_space<vmem>>, %arg3: memref<1x16x160xf32, #tpu.memory_space<vmem>>, %arg4: memref<1x16x160xf32, #tpu.memory_space<vmem>>, %arg5: memref<480x512xf32, #tpu.memory_space<vmem>>, %arg6: memref<256x128xf32, #tpu.memory_space<vmem>>, %arg7: memref<1x16x128xf32, #tpu.memory_space<vmem>>) attributes {dimension_semantics = [#tpu.dimension_semantics<parallel>, #tpu.dimension_semantics<parallel>], iteration_bounds = array<i64: 2, 1>, scalar_prefetch = 0 : i64, scratch_operands = 0 : i64, tpu.core_type = #tpu.core_type<tc>, window_params = [{transform_indices = @transform_0, window_bounds = array<i64: 1, 16, 160>}, {transform_indices = @transform_1, window_bounds = array<i64: 1, 16, 160>}, {transform_indices = @transform_2, window_bounds = array<i64: 1, 16, 160>}, {pipeline_mode = #tpu.pipeline_mode<synchronous>, transform_indices = @transform_3, window_bounds = array<i64: 480, 512>}, {pipeline_mode = #tpu.pipeline_mode<synchronous>, transform_indices = @transform_4, window_bounds = array<i64: 256, 128>}, {transform_indices = @transform_5, window_bounds = array<i64: 1, 16, 128>}]} {
    %c0 = arith.constant 0 : index
    %c0_0 = arith.constant 0 : index
    %c0_1 = arith.constant 0 : index
    %0 = vector.load %arg2[%c0, %c0_0, %c0_1] : memref<1x16x160xf32, #tpu.memory_space<vmem>>, vector<1x16x160xf32>
    %1 = vector.shape_cast %0 : vector<1x16x160xf32> to vector<16x160xf32>
    %c0_2 = arith.constant 0 : index
    %c0_3 = arith.constant 0 : index
    %2 = vector.load %arg5[%c0_2, %c0_3] : memref<480x512xf32, #tpu.memory_space<vmem>>, vector<160x512xf32>
    %cst = arith.constant dense<0.000000e+00> : vector<16x512xf32>
    %3 = tpu.matmul %1, %2, %cst {dimension_numbers = #tpu.dot_dimension_numbers<[1], [0], [0], [1], [0, 0, 1, 1], [], []>} : vector<16x160xf32>, vector<160x512xf32>, vector<16x512xf32> -> vector<16x512xf32>
    %c0_4 = arith.constant 0 : index
    %c0_5 = arith.constant 0 : index
    %c0_6 = arith.constant 0 : index
    %4 = vector.load %arg3[%c0_4, %c0_5, %c0_6] : memref<1x16x160xf32, #tpu.memory_space<vmem>>, vector<1x16x160xf32>
    %5 = vector.shape_cast %4 : vector<1x16x160xf32> to vector<16x160xf32>
    %c160 = arith.constant 160 : index
    %c0_7 = arith.constant 0 : index
    %6 = vector.load %arg5[%c160, %c0_7] : memref<480x512xf32, #tpu.memory_space<vmem>>, vector<160x512xf32>
    %cst_8 = arith.constant dense<0.000000e+00> : vector<16x512xf32>
    %7 = tpu.matmul %5, %6, %cst_8 {dimension_numbers = #tpu.dot_dimension_numbers<[1], [0], [0], [1], [0, 0, 1, 1], [], []>} : vector<16x160xf32>, vector<160x512xf32>, vector<16x512xf32> -> vector<16x512xf32>
    %8 = arith.addf %3, %7 : vector<16x512xf32>
    %c0_9 = arith.constant 0 : index
    %c0_10 = arith.constant 0 : index
    %c0_11 = arith.constant 0 : index
    %9 = vector.load %arg4[%c0_9, %c0_10, %c0_11] : memref<1x16x160xf32, #tpu.memory_space<vmem>>, vector<1x16x160xf32>
    %10 = vector.shape_cast %9 : vector<1x16x160xf32> to vector<16x160xf32>
    %c320 = arith.constant 320 : index
    %c0_12 = arith.constant 0 : index
    %11 = vector.load %arg5[%c320, %c0_12] : memref<480x512xf32, #tpu.memory_space<vmem>>, vector<160x512xf32>
    %cst_13 = arith.constant dense<0.000000e+00> : vector<16x512xf32>
    %12 = tpu.matmul %10, %11, %cst_13 {dimension_numbers = #tpu.dot_dimension_numbers<[1], [0], [0], [1], [0, 0, 1, 1], [], []>} : vector<16x160xf32>, vector<160x512xf32>, vector<16x512xf32> -> vector<16x512xf32>
    %13 = arith.addf %8, %12 : vector<16x512xf32>
    %14 = vector.extract_strided_slice %13 {offsets = [0, 0], sizes = [16, 256], strides = [1, 1]} : vector<16x512xf32> to vector<16x256xf32>
    %15 = vector.extract_strided_slice %13 {offsets = [0, 256], sizes = [16, 256], strides = [1, 1]} : vector<16x512xf32> to vector<16x256xf32>
    %16 = arith.mulf %14, %14 : vector<16x256xf32>
    %17 = arith.mulf %15, %15 : vector<16x256xf32>
    %18 = arith.addf %16, %17 : vector<16x256xf32>
    %19 = math.sqrt %18 : vector<16x256xf32>
    %c0_14 = arith.constant 0 : index
    %c0_15 = arith.constant 0 : index
    %20 = vector.load %arg6[%c0_14, %c0_15] : memref<256x128xf32, #tpu.memory_space<vmem>>, vector<256x128xf32>
    %cst_16 = arith.constant dense<0.000000e+00> : vector<16x128xf32>
    %21 = tpu.matmul %19, %20, %cst_16 {dimension_numbers = #tpu.dot_dimension_numbers<[1], [0], [0], [1], [0, 0, 1, 1], [], []>} : vector<16x256xf32>, vector<256x128xf32>, vector<16x128xf32> -> vector<16x128xf32>
    %22 = arith.mulf %21, %21 : vector<16x128xf32>
    %cst_17 = arith.constant 9.99999993E-9 : f32
    %23 = vector.broadcast %cst_17 : f32 to vector<16x128xf32>
    %24 = arith.addf %22, %23 : vector<16x128xf32>
    %25 = math.log %24 : vector<16x128xf32>
    %cst_18 = arith.constant 4.34294462 : f32
    %26 = vector.broadcast %cst_18 : f32 to vector<16x128xf32>
    %27 = arith.mulf %26, %25 : vector<16x128xf32>
    %c0_19 = arith.constant 0 : index
    %c0_20 = arith.constant 0 : index
    %c0_21 = arith.constant 0 : index
    %28 = vector.load %arg7[%c0_19, %c0_20, %c0_21] : memref<1x16x128xf32, #tpu.memory_space<vmem>>, vector<1x16x128xf32>
    %29 = vector.shape_cast %28 : vector<1x16x128xf32> to vector<16x128xf32>
    %30 = vector.shape_cast %27 : vector<16x128xf32> to vector<1x16x128xf32>
    tpu.vector_store %arg7[%c0_19, %c0_20, %c0_21], %30 {strides = array<i32>} : memref<1x16x128xf32, #tpu.memory_space<vmem>>, vector<1x16x128xf32>,
    return
  }
  func.func @transform_0(%arg0: i32, %arg1: i32) -> (i32, i32, i32) {
    %c0_i32 = arith.constant 0 : i32
    %c0_i32_0 = arith.constant 0 : i32
    return %arg0, %arg1, %c0_i32 : i32, i32, i32
  }
  func.func @transform_1(%arg0: i32, %arg1: i32) -> (i32, i32, i32) {
    %c0_i32 = arith.constant 0 : i32
    %c0_i32_0 = arith.constant 0 : i32
    return %arg0, %arg1, %c0_i32 : i32, i32, i32
  }
  func.func @transform_2(%arg0: i32, %arg1: i32) -> (i32, i32, i32) {
    %c0_i32 = arith.constant 0 : i32
    %c0_i32_0 = arith.constant 0 : i32
    return %arg0, %arg1, %c0_i32 : i32, i32, i32
  }
  func.func @transform_3(%arg0: i32, %arg1: i32) -> (i32, i32) {
    %c0_i32 = arith.constant 0 : i32
    %c0_i32_0 = arith.constant 0 : i32
    %c0_i32_1 = arith.constant 0 : i32
    return %c0_i32, %c0_i32_0 : i32, i32
  }
  func.func @transform_4(%arg0: i32, %arg1: i32) -> (i32, i32) {
    %c0_i32 = arith.constant 0 : i32
    %c0_i32_0 = arith.constant 0 : i32
    %c0_i32_1 = arith.constant 0 : i32
    return %c0_i32, %c0_i32_0 : i32, i32
  }
  func.func @transform_5(%arg0: i32, %arg1: i32) -> (i32, i32, i32) {
    %c0_i32 = arith.constant 0 : i32
    %c0_i32_0 = arith.constant 0 : i32
    return %arg0, %arg1, %c0_i32 : i32, i32, i32
  }
}

</mosaic_0001>

<llo_original>
// kernel: tpu_custom_call.1
$region0: #{tpu_custom_call.1}
  #allocation0 [shape = 'u32[]', space=smem, size = 0x4, offset = 0x4, fixed_abs, tag = 'smem constant byte address 0x4 - core index']
  #allocation1 [shape = 'u32[144,128]{1,0:T(1,128)}', space=vmem, size = 0x12000, scoped, tag = 'internal scratch']
  %s0 = inlined_call_operand.hbm [shape: f32[2,16,160], index: 0, kind: input, shape index: {}]
  %s1 = inlined_call_operand.hbm [shape: f32[2,16,160], index: 1, kind: input, shape index: {}]
  %s2 = inlined_call_operand.hbm [shape: f32[2,16,160], index: 2, kind: input, shape index: {}]
  %s3 = inlined_call_operand.hbm [shape: f32[480,512], index: 3, kind: input, shape index: {}]
  %s4 = inlined_call_operand.hbm [shape: f32[256,128], index: 4, kind: input, shape index: {}]
  %s5 = inlined_call_operand.hbm [shape: f32[2,16,128], index: 5, kind: output, shape index: {}]
  %s6 = sld [smem:[#allocation0]]
  $region73: #{tpu_custom_call.1} parent=0
    _
  %s8 = ssub.s32 1, %s6
  %s9 = scalar_select 0, %s8, %s6
  $region1: #{tpu_custom_call.1} parent=0
    #allocation2 [shape = 'u8[32768]{0}', space=vmem, size = 0x8000, scoped, tag = 'input window, operand 0']
    #allocation3 [shape = 's32[2]{0}', space=sflag, size = 0x8, scoped, tag = 'scoped memory for tpu_custom_call.1']
    #allocation4 [shape = 's32[2]{0}', space=sflag, size = 0x8, scoped, tag = 'scoped memory for tpu_custom_call.1']
    #allocation5 [shape = 'u8[32768]{0}', space=vmem, size = 0x8000, scoped, tag = 'input window, operand 1']
    #allocation6 [shape = 's32[2]{0}', space=sflag, size = 0x8, scoped, tag = 'scoped memory for tpu_custom_call.1']
    #allocation7 [shape = 'u8[32768]{0}', space=vmem, size = 0x8000, scoped, tag = 'input window, operand 2']
    #allocation8 [shape = 'u8[983040]{0}', space=vmem, size = 0xf0000, scoped, tag = 'input window, operand 3, single buffered']
    #allocation9 [shape = 's32[1]{0}', space=sflag, size = 0x4, scoped, tag = 'scoped memory for tpu_custom_call.1']
    #allocation10 [shape = 'u8[131072]{0}', space=vmem, size = 0x20000, scoped, tag = 'input window, operand 4, single buffered']
    #allocation11 [shape = 'u8[16384]{0}', space=vmem, size = 0x4000, scoped, tag = 'output window, operand 0']
    %10 = vsyncpa [#allocation3], 0
    %s11 = scalar_lea.sflag [#allocation3], 1
    %12 = vsyncpa %s11, 0
    %13 = vsyncpa [#allocation6], 0
    %s14 = scalar_lea.sflag [#allocation6], 1
    %15 = vsyncpa %s14, 0
    %16 = vsyncpa [#allocation9], 0
    %17 = vsyncpa [#allocation4], 0
    %s18 = scalar_lea.sflag [#allocation4], 1
    %19 = vsyncpa %s18, 0
    loop: start=0, step=1, limit=4
    $region2: #{tpu_custom_call.1} parent=1 // loop_pre_header
      _
    $region3: #{tpu_custom_call.1} parent=1 // loop_header
      %s21 = sphi 0, %s25
      %p22 = scmp.ge.s32.totalorder %s21, 4
      %s28 = sphi 0, %s40
      %s29 = sphi 0, %s36
      %s30 = sphi 0, %s28
      %s31 = sphi 0, %s29
      %s32 = sphi 0, %s30
      %s33 = sphi 0, %s31
      %s45 = sphi 0, %s47
      %s48 = sphi 0, %s45
      %s49 = sphi 0, %s48
      %s65 = sphi 0, %s49
      %s73 = sphi 0, %s75
      %s76 = sphi 0, %s73
      %s77 = sphi 0, %s76
      %s93 = sphi 0, %s77
      %s101 = sphi 0, %s103
      %s104 = sphi 0, %s101
      %s105 = sphi 0, %s104
      %s121 = sphi 0, %s105
      %s125 = sphi 0, %s125
      %s127 = sphi 0, %s125
      %s128 = sphi 0, %s127
      %s142 = sphi 0, %s128
      %s146 = sphi 0, %s146
      %s148 = sphi 0, %s146
      %s149 = sphi 0, %s148
      %s163 = sphi 0, %s149
      %s171 = sphi 0, %s173
      %s174 = sphi 0, %s171
      %s175 = sphi 0, %s174
      %s191 = sphi 0, %s175
    $region4: #{tpu_custom_call.1} parent=1 // loop_header_branch
      %24 = sbr.rel (%p22) target = $region8
    $region5: #{tpu_custom_call.1} parent=1 // loop_body
      %s26 = ssub.s32 %s21, 1
      %s27 = ssub.s32 %s21, 2
      %s34 = sadd.s32 1, %s29
      %p35 = scmp.ge.s32.totalorder %s34, 1
      %s36 = scalar_select %p35, 0, %s34
      %s37 = sadd.s32 1, %s28
      %s38 = scalar_select %p35, %s37, %s28
      %p39 = scmp.ge.s32.totalorder %s38, 2
      %s40 = scalar_select %p39, 0, %s38
      %s41 = ssub.s32 %s28, %s40
      %s42 = ssub.s32 %s29, %s36
      %s43 = sor.u32 %s41, %s42
      %p44 = scmp.eq.s32.totalorder %s43, 0
      %s46 = sadd.s32 %s45, 1
      %s47 = scalar_select %p44, %s45, %s46
      %p50 = pneg %p44
      %p51 = scmp.eq.s32.totalorder %s21, 1
      %p52 = por %p50, %p51
      %p53 = scmp.ne.s32.totalorder %s45, %s48
      %p54 = scmp.eq.s32.totalorder %s21, 0
      %p55 = por %p53, %p54
      %p56 = scmp.ne.s32.totalorder %s45, %s48
      %p57 = scmp.eq.s32.totalorder %s26, 1
      %p58 = por %p56, %p57
      %p59 = scmp.ne.s32.totalorder %s48, %s49
      %p60 = scmp.eq.s32.totalorder %s26, 0
      %p61 = por %p59, %p60
      %p62 = scmp.ne.s32.totalorder %s48, %s49
      %p63 = scmp.eq.s32.totalorder %s27, 1
      %p64 = por %p62, %p63
      %p66 = scmp.ne.s32.totalorder %s49, %s65
      %p67 = scmp.eq.s32.totalorder %s27, 0
      %p68 = por %p66, %p67
      %s69 = ssub.s32 %s28, %s40
      %s70 = ssub.s32 %s29, %s36
      %s71 = sor.u32 %s69, %s70
      %p72 = scmp.eq.s32.totalorder %s71, 0
      %s74 = sadd.s32 %s73, 1
      %s75 = scalar_select %p72, %s73, %s74
      %p78 = pneg %p72
      %p79 = scmp.eq.s32.totalorder %s21, 1
      %p80 = por %p78, %p79
      %p81 = scmp.ne.s32.totalorder %s73, %s76
      %p82 = scmp.eq.s32.totalorder %s21, 0
      %p83 = por %p81, %p82
      %p84 = scmp.ne.s32.totalorder %s73, %s76
      %p85 = scmp.eq.s32.totalorder %s26, 1
      %p86 = por %p84, %p85
      %p87 = scmp.ne.s32.totalorder %s76, %s77
      %p88 = scmp.eq.s32.totalorder %s26, 0
      %p89 = por %p87, %p88
      %p90 = scmp.ne.s32.totalorder %s76, %s77
      %p91 = scmp.eq.s32.totalorder %s27, 1
      %p92 = por %p90, %p91
      %p94 = scmp.ne.s32.totalorder %s77, %s93
      %p95 = scmp.eq.s32.totalorder %s27, 0
      %p96 = por %p94, %p95
      %s97 = ssub.s32 %s28, %s40
      %s98 = ssub.s32 %s29, %s36
      %s99 = sor.u32 %s97, %s98
      %p100 = scmp.eq.s32.totalorder %s99, 0
      %s102 = sadd.s32 %s101, 1
      %s103 = scalar_select %p100, %s101, %s102
      %p106 = pneg %p100
      %p107 = scmp.eq.s32.totalorder %s21, 1
      %p108 = por %p106, %p107
      %p109 = scmp.ne.s32.totalorder %s101, %s104
      %p110 = scmp.eq.s32.totalorder %s21, 0
      %p111 = por %p109, %p110
      %p112 = scmp.ne.s32.totalorder %s101, %s104
      %p113 = scmp.eq.s32.totalorder %s26, 1
      %p114 = por %p112, %p113
      %p115 = scmp.ne.s32.totalorder %s104, %s105
      %p116 = scmp.eq.s32.totalorder %s26, 0
      %p117 = por %p115, %p116
      %p118 = scmp.ne.s32.totalorder %s104, %s105
      %p119 = scmp.eq.s32.totalorder %s27, 1
      %p120 = por %p118, %p119
      %p122 = scmp.ne.s32.totalorder %s105, %s121
      %p123 = scmp.eq.s32.totalorder %s27, 0
      %p124 = por %p122, %p123
      %s126 = sadd.s32 %s125, 1
      %p129 = scmp.eq.s32.totalorder %s21, 1
      %p130 = scmp.ne.s32.totalorder %s125, %s127
      %p131 = scmp.eq.s32.totalorder %s21, 0
      %p132 = por %p130, %p131
      %p133 = scmp.ne.s32.totalorder %s125, %s127
      %p134 = scmp.eq.s32.totalorder %s26, 1
      %p135 = por %p133, %p134
      %p136 = scmp.ne.s32.totalorder %s127, %s128
      %p137 = scmp.eq.s32.totalorder %s26, 0
      %p138 = por %p136, %p137
      %p139 = scmp.ne.s32.totalorder %s127, %s128
      %p140 = scmp.eq.s32.totalorder %s27, 1
      %p141 = por %p139, %p140
      %p143 = scmp.ne.s32.totalorder %s128, %s142
      %p144 = scmp.eq.s32.totalorder %s27, 0
      %p145 = por %p143, %p144
      %s147 = sadd.s32 %s146, 1
      %p150 = scmp.eq.s32.totalorder %s21, 1
      %p151 = scmp.ne.s32.totalorder %s146, %s148
      %p152 = scmp.eq.s32.totalorder %s21, 0
      %p153 = por %p151, %p152
      %p154 = scmp.ne.s32.totalorder %s146, %s148
      %p155 = scmp.eq.s32.totalorder %s26, 1
      %p156 = por %p154, %p155
      %p157 = scmp.ne.s32.totalorder %s148, %s149
      %p158 = scmp.eq.s32.totalorder %s26, 0
      %p159 = por %p157, %p158
      %p160 = scmp.ne.s32.totalorder %s148, %s149
      %p161 = scmp.eq.s32.totalorder %s27, 1
      %p162 = por %p160, %p161
      %p164 = scmp.ne.s32.totalorder %s149, %s163
      %p165 = scmp.eq.s32.totalorder %s27, 0
      %p166 = por %p164, %p165
      %s167 = ssub.s32 %s28, %s40
      %s168 = ssub.s32 %s29, %s36
      %s169 = sor.u32 %s167, %s168
      %p170 = scmp.eq.s32.totalorder %s169, 0
      %s172 = sadd.s32 %s171, 1
      %s173 = scalar_select %p170, %s171, %s172
      %p176 = pneg %p170
      %p177 = scmp.eq.s32.totalorder %s21, 1
      %p178 = por %p176, %p177
      %p179 = scmp.ne.s32.totalorder %s171, %s174
      %p180 = scmp.eq.s32.totalorder %s21, 0
      %p181 = por %p179, %p180
      %p182 = scmp.ne.s32.totalorder %s171, %s174
      %p183 = scmp.eq.s32.totalorder %s26, 1
      %p184 = por %p182, %p183
      %p185 = scmp.ne.s32.totalorder %s174, %s175
      %p186 = scmp.eq.s32.totalorder %s26, 0
      %p187 = por %p185, %p186
      %p188 = scmp.ne.s32.totalorder %s174, %s175
      %p189 = scmp.eq.s32.totalorder %s27, 1
      %p190 = por %p188, %p189
      %p192 = scmp.ne.s32.totalorder %s175, %s191
      %p193 = scmp.eq.s32.totalorder %s27, 0
      %p194 = por %p192, %p193
      %p195 = scmp.le.s32.totalorder 1, %s21
      %p196 = scmp.lt.s32.totalorder %s21, 3
      %p197 = pnand %p195, %p196
      %p198 = pneg %p197
      // Predicated region
      $region9: #{tpu_custom_call.1} parent=5 // pred_check
        _
      $region10: #{tpu_custom_call.1} parent=5 // pred_check_branch
        %200 = sbr.rel (%p197) target = $region12
      $region11: #{tpu_custom_call.1} parent=5 // pred_region
        %s201 = ssub.s32 %s21, 1
        // Predicated region
        $region13: #{tpu_custom_call.1} parent=11 // pred_check
          %p202 = pneg %p138
        $region14: #{tpu_custom_call.1} parent=11 // pred_check_branch
          %204 = sbr.rel (%p202) target = $region16
        $region15: #{tpu_custom_call.1} parent=11 // pred_region
          %s206 = ssub.s32 30720, 30720
          %207 = vsyncadd [#allocation9], %s206
          %s208 = sshll.u32 [#allocation8], 4
          %s209 = int_to_ptr.vmem [resolvable:$true] %s208
          %214 = dma.hbm_to_vmem [thread:$0]  %s3, 30720, %s209, [#allocation9], 512, 512, 32
        $region16: #{tpu_custom_call.1} parent=11 // pred_fallthru
          _
        // Predicated region
        $region17: #{tpu_custom_call.1} parent=11 // pred_check
          %p215 = pneg %p159
        $region18: #{tpu_custom_call.1} parent=11 // pred_check_branch
          %217 = sbr.rel (%p215) target = $region20
        $region19: #{tpu_custom_call.1} parent=11 // pred_region
          %s219 = ssub.s32 4096, 4096
          %220 = vsyncadd [#allocation9], %s219
          %s221 = sshll.u32 [#allocation10], 4
          %s222 = int_to_ptr.vmem [resolvable:$true] %s221
          %227 = dma.hbm_to_vmem [thread:$0]  %s4, 4096, %s222, [#allocation9], 128, 128, 8
        $region20: #{tpu_custom_call.1} parent=11 // pred_fallthru
          _
      $region12: #{tpu_custom_call.1} parent=5 // pred_fallthru
        _
      %p228 = scmp.lt.s32.totalorder %s21, 2
      // Predicated region
      $region21: #{tpu_custom_call.1} parent=5 // pred_check
        %p229 = pneg %p228
      $region22: #{tpu_custom_call.1} parent=5 // pred_check_branch
        %231 = sbr.rel (%p229) target = $region24
      $region23: #{tpu_custom_call.1} parent=5 // pred_region
        // Predicated region
        $region25: #{tpu_custom_call.1} parent=23 // pred_check
          %p232 = pneg %p55
        $region26: #{tpu_custom_call.1} parent=23 // pred_check_branch
          %234 = sbr.rel (%p232) target = $region28
        $region27: #{tpu_custom_call.1} parent=23 // pred_region
          %s235 = sand.u32 %s45, 1
          %s236 = scalar_lea.sflag [#allocation3], %s235
          %s237 = sand.u32 %s45, 1
          %s238 = smul.addr %s237, 32
          %s239 = scalar_lea.vmem [#allocation2], %s238
          %s240 = smul.u32 2, %s29
          %s242 = ssub.s32 512, 512
          %243 = vsyncadd %s236, %s242
          %s244 = smul.addr %s240, 2
          %s245 = smul.addr %s28, 4
          %s246 = sadd.s32 %s244, %s245
          %s247 = smul.addr %s246, 128
          %s248 = scalar_lea.hbm %s0, %s247
          %s249 = sshll.u32 %s239, 4
          %s250 = int_to_ptr.vmem [resolvable:$true] %s249
          %255 = dma.hbm_to_vmem [thread:$0]  %s248, 512, %s250, %s236, 256, 256, 16
        $region28: #{tpu_custom_call.1} parent=23 // pred_fallthru
          _
        // Predicated region
        $region29: #{tpu_custom_call.1} parent=23 // pred_check
          %p256 = pneg %p83
        $region30: #{tpu_custom_call.1} parent=23 // pred_check_branch
          %258 = sbr.rel (%p256) target = $region32
        $region31: #{tpu_custom_call.1} parent=23 // pred_region
          %s259 = sand.u32 %s21, 1
          %s260 = scalar_lea.sflag [#allocation6], %s259
          %s261 = sand.u32 %s73, 1
          %s262 = smul.addr %s261, 32
          %s263 = scalar_lea.vmem [#allocation5], %s262
          %s264 = smul.u32 2, %s29
          %s266 = ssub.s32 512, 512
          %267 = vsyncadd %s260, %s266
          %s268 = smul.addr %s264, 2
          %s269 = smul.addr %s28, 4
          %s270 = sadd.s32 %s268, %s269
          %s271 = smul.addr %s270, 128
          %s272 = scalar_lea.hbm %s1, %s271
          %s273 = sshll.u32 %s263, 4
          %s274 = int_to_ptr.vmem [resolvable:$true] %s273
          %279 = dma.hbm_to_vmem [thread:$0]  %s272, 512, %s274, %s260, 256, 256, 16
        $region32: #{tpu_custom_call.1} parent=23 // pred_fallthru
          _
        // Predicated region
        $region33: #{tpu_custom_call.1} parent=23 // pred_check
          %p280 = pneg %p111
        $region34: #{tpu_custom_call.1} parent=23 // pred_check_branch
          %282 = sbr.rel (%p280) target = $region36
        $region35: #{tpu_custom_call.1} parent=23 // pred_region
          %s283 = sand.u32 %s21, 1
          %s284 = scalar_lea.sflag [#allocation6], %s283
          %s285 = sand.u32 %s101, 1
          %s286 = smul.addr %s285, 32
          %s287 = scalar_lea.vmem [#allocation7], %s286
          %s288 = smul.u32 2, %s29
          %s290 = ssub.s32 512, 512
          %291 = vsyncadd %s284, %s290
          %s292 = smul.addr %s288, 2
          %s293 = smul.addr %s28, 4
          %s294 = sadd.s32 %s292, %s293
          %s295 = smul.addr %s294, 128
          %s296 = scalar_lea.hbm %s2, %s295
          %s297 = sshll.u32 %s287, 4
          %s298 = int_to_ptr.vmem [resolvable:$true] %s297
          %303 = dma.hbm_to_vmem [thread:$0]  %s296, 512, %s298, %s284, 256, 256, 16
        $region36: #{tpu_custom_call.1} parent=23 // pred_fallthru
          _
      $region24: #{tpu_custom_call.1} parent=5 // pred_fallthru
        _
      %p304 = scmp.le.s32.totalorder 1, %s21
      %p305 = scmp.lt.s32.totalorder %s21, 3
      %p306 = pnand %p304, %p305
      %p307 = pneg %p306
      // Predicated region
      $region37: #{tpu_custom_call.1} parent=5 // pred_check
        _
      $region38: #{tpu_custom_call.1} parent=5 // pred_check_branch
        %309 = sbr.rel (%p306) target = $region40
      $region39: #{tpu_custom_call.1} parent=5 // pred_region
        %s310 = ssub.s32 %s21, 1
        %s311 = sand.u32 %s48, 1
        %s312 = scalar_lea.sflag [#allocation3], %s311
        %s313 = sand.u32 %s48, 1
        %s314 = smul.addr %s313, 32
        %s315 = scalar_lea.vmem [#allocation2], %s314
        // Predicated region
        $region41: #{tpu_custom_call.1} parent=39 // pred_check
          %p316 = pneg %p61
        $region42: #{tpu_custom_call.1} parent=39 // pred_check_branch
          %318 = sbr.rel (%p316) target = $region44
        $region43: #{tpu_custom_call.1} parent=39 // pred_region
          %319 = dma.done %s312, 512
        $region44: #{tpu_custom_call.1} parent=39 // pred_fallthru
          _
        %s320 = sand.u32 %s26, 1
        %s321 = scalar_lea.sflag [#allocation6], %s320
        %s322 = sand.u32 %s76, 1
        %s323 = smul.addr %s322, 32
        %s324 = scalar_lea.vmem [#allocation5], %s323
        // Predicated region
        $region45: #{tpu_custom_call.1} parent=39 // pred_check
          %p325 = pneg %p89
        $region46: #{tpu_custom_call.1} parent=39 // pred_check_branch
          %327 = sbr.rel (%p325) target = $region48
        $region47: #{tpu_custom_call.1} parent=39 // pred_region
          %328 = dma.done %s321, 512
        $region48: #{tpu_custom_call.1} parent=39 // pred_fallthru
          _
        %s329 = sand.u32 %s26, 1
        %s330 = scalar_lea.sflag [#allocation6], %s329
        %s331 = sand.u32 %s104, 1
        %s332 = smul.addr %s331, 32
        %s333 = scalar_lea.vmem [#allocation7], %s332
        // Predicated region
        $region49: #{tpu_custom_call.1} parent=39 // pred_check
          %p334 = pneg %p117
        $region50: #{tpu_custom_call.1} parent=39 // pred_check_branch
          %336 = sbr.rel (%p334) target = $region52
        $region51: #{tpu_custom_call.1} parent=39 // pred_region
          %337 = dma.done %s330, 512
        $region52: #{tpu_custom_call.1} parent=39 // pred_fallthru
          _
        // Predicated region
        $region53: #{tpu_custom_call.1} parent=39 // pred_check
          %p338 = pneg %p138
        $region54: #{tpu_custom_call.1} parent=39 // pred_check_branch
          %340 = sbr.rel (%p338) target = $region56
        $region55: #{tpu_custom_call.1} parent=39 // pred_region
          %341 = dma.done [#allocation9], 30720
        $region56: #{tpu_custom_call.1} parent=39 // pred_fallthru
          _
        // Predicated region
        $region57: #{tpu_custom_call.1} parent=39 // pred_check
          %p342 = pneg %p159
        $region58: #{tpu_custom_call.1} parent=39 // pred_check_branch
          %344 = sbr.rel (%p342) target = $region60
        $region59: #{tpu_custom_call.1} parent=39 // pred_region
          %345 = dma.done [#allocation9], 4096
        $region60: #{tpu_custom_call.1} parent=39 // pred_fallthru
          _
        %s346 = sand.u32 %s48, 1
        %s347 = scalar_lea.sflag [#allocation3], %s346
        %s348 = sand.u32 %s48, 1
        %s349 = smul.addr %s348, 32
        %s350 = scalar_lea.vmem [#allocation2], %s349
        %p351 = pneg %p61
        %p352 = pneg %p58
        %s353 = sand.u32 %s26, 1
        %s354 = scalar_lea.sflag [#allocation6], %s353
        %s355 = sand.u32 %s76, 1
        %s356 = smul.addr %s355, 32
        %s357 = scalar_lea.vmem [#allocation5], %s356
        %p358 = pneg %p89
        %p359 = pneg %p86
        %s360 = sand.u32 %s26, 1
        %s361 = scalar_lea.sflag [#allocation6], %s360
        %s362 = sand.u32 %s104, 1
        %s363 = smul.addr %s362, 32
        %s364 = scalar_lea.vmem [#allocation7], %s363
        %p365 = pneg %p117
        %p366 = pneg %p114
        %p367 = pneg %p138
        %p368 = pneg %p135
        %p369 = pneg %p159
        %p370 = pneg %p156
        %p371 = pneg %p187
        %p372 = pneg %p184
        %s373 = sand.u32 %s174, 1
        %s374 = scalar_lea.sflag [#allocation4], %s373
        %s375 = sand.u32 %s174, 1
        %s376 = smul.addr %s375, 16
        %s377 = scalar_lea.vmem [#allocation11], %s376
        %s378 = smul.u32 2, %s31
        %s379 = smul.u32 2, %s31
        %s380 = smul.u32 2, %s31
        %s381 = smul.u32 2, %s31
        %v382 = vld [vmem:[%s315] sm:$0xff]
        %v383 = vld [vmem:[%s315 + $0x8] sm:$0xff]
        %v384 = vld [vmem:[%s315 + $0x10] sm:$0xff]
        %v385 = vld [vmem:[%s315 + $0x18] sm:$0xff]
        %v386 = vld [vmem:[#allocation8] sm:$0xff]
        %v387 = vld [vmem:[#allocation8 + $0x8] sm:$0xff]
        %v388 = vld [vmem:[#allocation8 + $0x10] sm:$0xff]
        %v389 = vld [vmem:[#allocation8 + $0x18] sm:$0xff]
        %v390 = vld [vmem:[#allocation8 + $0x20] sm:$0xff]
        %v391 = vld [vmem:[#allocation8 + $0x28] sm:$0xff]
        %v392 = vld [vmem:[#allocation8 + $0x30] sm:$0xff]
        %v393 = vld [vmem:[#allocation8 + $0x38] sm:$0xff]
        %v394 = vld [vmem:[#allocation8 + $0x40] sm:$0xff]
        %v395 = vld [vmem:[#allocation8 + $0x48] sm:$0xff]
        %v396 = vld [vmem:[#allocation8 + $0x50] sm:$0xff]
        %v397 = vld [vmem:[#allocation8 + $0x58] sm:$0xff]
        %v398 = vld [vmem:[#allocation8 + $0x60] sm:$0xff]
        %v399 = vld [vmem:[#allocation8 + $0x68] sm:$0xff]
        %v400 = vld [vmem:[#allocation8 + $0x70] sm:$0xff]
        %v401 = vld [vmem:[#allocation8 + $0x78] sm:$0xff]
        %v402 = vld [vmem:[#allocation8 + $0x80] sm:$0xff]
        %v403 = vld [vmem:[#allocation8 + $0x88] sm:$0xff]
        %v404 = vld [vmem:[#allocation8 + $0x90] sm:$0xff]
        %v405 = vld [vmem:[#allocation8 + $0x98] sm:$0xff]
        %v406 = vld [vmem:[#allocation8 + $0xa0] sm:$0xff]
        %v407 = vld [vmem:[#allocation8 + $0xa8] sm:$0xff]
        %v408 = vld [vmem:[#allocation8 + $0xb0] sm:$0xff]
        %v409 = vld [vmem:[#allocation8 + $0xb8] sm:$0xff]
        %v410 = vld [vmem:[#allocation8 + $0xc0] sm:$0xff]
        %v411 = vld [vmem:[#allocation8 + $0xc8] sm:$0xff]
        %v412 = vld [vmem:[#allocation8 + $0xd0] sm:$0xff]
        %v413 = vld [vmem:[#allocation8 + $0xd8] sm:$0xff]
        %v414 = vld [vmem:[#allocation8 + $0xe0] sm:$0xff]
        %v415 = vld [vmem:[#allocation8 + $0xe8] sm:$0xff]
        %v416 = vld [vmem:[#allocation8 + $0xf0] sm:$0xff]
        %v417 = vld [vmem:[#allocation8 + $0xf8] sm:$0xff]
        %v418 = vld [vmem:[#allocation8 + $0x100] sm:$0xff]
        %v419 = vld [vmem:[#allocation8 + $0x108] sm:$0xff]
        %v420 = vld [vmem:[#allocation8 + $0x110] sm:$0xff]
        %v421 = vld [vmem:[#allocation8 + $0x118] sm:$0xff]
        %v422 = vld [vmem:[#allocation8 + $0x120] sm:$0xff]
        %v423 = vld [vmem:[#allocation8 + $0x128] sm:$0xff]
        %v424 = vld [vmem:[#allocation8 + $0x130] sm:$0xff]
        %v425 = vld [vmem:[#allocation8 + $0x138] sm:$0xff]
        %v426 = vld [vmem:[#allocation8 + $0x140] sm:$0xff]
        %v427 = vld [vmem:[#allocation8 + $0x148] sm:$0xff]
        %v428 = vld [vmem:[#allocation8 + $0x150] sm:$0xff]
        %v429 = vld [vmem:[#allocation8 + $0x158] sm:$0xff]
        %v430 = vld [vmem:[#allocation8 + $0x160] sm:$0xff]
        %v431 = vld [vmem:[#allocation8 + $0x168] sm:$0xff]
        %v432 = vld [vmem:[#allocation8 + $0x170] sm:$0xff]
        %v433 = vld [vmem:[#allocation8 + $0x178] sm:$0xff]
        %v434 = vld [vmem:[#allocation8 + $0x180] sm:$0xff]
        %v435 = vld [vmem:[#allocation8 + $0x188] sm:$0xff]
        %v436 = vld [vmem:[#allocation8 + $0x190] sm:$0xff]
        %v437 = vld [vmem:[#allocation8 + $0x198] sm:$0xff]
        %v438 = vld [vmem:[#allocation8 + $0x1a0] sm:$0xff]
        %v439 = vld [vmem:[#allocation8 + $0x1a8] sm:$0xff]
        %v440 = vld [vmem:[#allocation8 + $0x1b0] sm:$0xff]
        %v441 = vld [vmem:[#allocation8 + $0x1b8] sm:$0xff]
        %v442 = vld [vmem:[#allocation8 + $0x1c0] sm:$0xff]
        %v443 = vld [vmem:[#allocation8 + $0x1c8] sm:$0xff]
        %v444 = vld [vmem:[#allocation8 + $0x1d0] sm:$0xff]
        %v445 = vld [vmem:[#allocation8 + $0x1d8] sm:$0xff]
        %v446 = vld [vmem:[#allocation8 + $0x1e0] sm:$0xff]
        %v447 = vld [vmem:[#allocation8 + $0x1e8] sm:$0xff]
        %v448 = vld [vmem:[#allocation8 + $0x1f0] sm:$0xff]
        %v449 = vld [vmem:[#allocation8 + $0x1f8] sm:$0xff]
        %v450 = vld [vmem:[#allocation8 + $0x200] sm:$0xff]
        %v451 = vld [vmem:[#allocation8 + $0x208] sm:$0xff]
        %v452 = vld [vmem:[#allocation8 + $0x210] sm:$0xff]
        %v453 = vld [vmem:[#allocation8 + $0x218] sm:$0xff]
        %v454 = vld [vmem:[#allocation8 + $0x220] sm:$0xff]
        %v455 = vld [vmem:[#allocation8 + $0x228] sm:$0xff]
        %v456 = vld [vmem:[#allocation8 + $0x230] sm:$0xff]
        %v457 = vld [vmem:[#allocation8 + $0x238] sm:$0xff]
        %v458 = vld [vmem:[#allocation8 + $0x240] sm:$0xff]
        %v459 = vld [vmem:[#allocation8 + $0x248] sm:$0xff]
        %v460 = vld [vmem:[#allocation8 + $0x250] sm:$0xff]
        %v461 = vld [vmem:[#allocation8 + $0x258] sm:$0xff]
        %v462 = vld [vmem:[#allocation8 + $0x260] sm:$0xff]
        %v463 = vld [vmem:[#allocation8 + $0x268] sm:$0xff]
        %v464 = vld [vmem:[#allocation8 + $0x270] sm:$0xff]
        %v465 = vld [vmem:[#allocation8 + $0x278] sm:$0xff]
        %v466 = vld [vmem:[%s324] sm:$0xff]
        %v467 = vld [vmem:[%s324 + $0x8] sm:$0xff]
        %v468 = vld [vmem:[%s324 + $0x10] sm:$0xff]
        %v469 = vld [vmem:[%s324 + $0x18] sm:$0xff]
        %v470 = vld [vmem:[#allocation8 + $0x280] sm:$0xff]
        %v471 = vld [vmem:[#allocation8 + $0x288] sm:$0xff]
        %v472 = vld [vmem:[#allocation8 + $0x290] sm:$0xff]
        %v473 = vld [vmem:[#allocation8 + $0x298] sm:$0xff]
        %v474 = vld [vmem:[#allocation8 + $0x2a0] sm:$0xff]
        %v475 = vld [vmem:[#allocation8 + $0x2a8] sm:$0xff]
        %v476 = vld [vmem:[#allocation8 + $0x2b0] sm:$0xff]
        %v477 = vld [vmem:[#allocation8 + $0x2b8] sm:$0xff]
        %v478 = vld [vmem:[#allocation8 + $0x2c0] sm:$0xff]
        %v479 = vld [vmem:[#allocation8 + $0x2c8] sm:$0xff]
        %v480 = vld [vmem:[#allocation8 + $0x2d0] sm:$0xff]
        %v481 = vld [vmem:[#allocation8 + $0x2d8] sm:$0xff]
        %v482 = vld [vmem:[#allocation8 + $0x2e0] sm:$0xff]
        %v483 = vld [vmem:[#allocation8 + $0x2e8] sm:$0xff]
        %v484 = vld [vmem:[#allocation8 + $0x2f0] sm:$0xff]
        %v485 = vld [vmem:[#allocation8 + $0x2f8] sm:$0xff]
        %v486 = vld [vmem:[#allocation8 + $0x300] sm:$0xff]
        %v487 = vld [vmem:[#allocation8 + $0x308] sm:$0xff]
        %v488 = vld [vmem:[#allocation8 + $0x310] sm:$0xff]
        %v489 = vld [vmem:[#allocation8 + $0x318] sm:$0xff]
        %v490 = vld [vmem:[#allocation8 + $0x320] sm:$0xff]
        %v491 = vld [vmem:[#allocation8 + $0x328] sm:$0xff]
        %v492 = vld [vmem:[#allocation8 + $0x330] sm:$0xff]
        %v493 = vld [vmem:[#allocation8 + $0x338] sm:$0xff]
        %v494 = vld [vmem:[#allocation8 + $0x340] sm:$0xff]
        %v495 = vld [vmem:[#allocation8 + $0x348] sm:$0xff]
        %v496 = vld [vmem:[#allocation8 + $0x350] sm:$0xff]
        %v497 = vld [vmem:[#allocation8 + $0x358] sm:$0xff]
        %v498 = vld [vmem:[#allocation8 + $0x360] sm:$0xff]
        %v499 = vld [vmem:[#allocation8 + $0x368] sm:$0xff]
        %v500 = vld [vmem:[#allocation8 + $0x370] sm:$0xff]
        %v501 = vld [vmem:[#allocation8 + $0x378] sm:$0xff]
        %v502 = vld [vmem:[#allocation8 + $0x380] sm:$0xff]
        %v503 = vld [vmem:[#allocation8 + $0x388] sm:$0xff]
        %v504 = vld [vmem:[#allocation8 + $0x390] sm:$0xff]
        %v505 = vld [vmem:[#allocation8 + $0x398] sm:$0xff]
        %v506 = vld [vmem:[#allocation8 + $0x3a0] sm:$0xff]
        %v507 = vld [vmem:[#allocation8 + $0x3a8] sm:$0xff]
        %v508 = vld [vmem:[#allocation8 + $0x3b0] sm:$0xff]
        %v509 = vld [vmem:[#allocation8 + $0x3b8] sm:$0xff]
        %v510 = vld [vmem:[#allocation8 + $0x3c0] sm:$0xff]
        %v511 = vld [vmem:[#allocation8 + $0x3c8] sm:$0xff]
        %v512 = vld [vmem:[#allocation8 + $0x3d0] sm:$0xff]
        %v513 = vld [vmem:[#allocation8 + $0x3d8] sm:$0xff]
        %v514 = vld [vmem:[#allocation8 + $0x3e0] sm:$0xff]
        %v515 = vld [vmem:[#allocation8 + $0x3e8] sm:$0xff]
        %v516 = vld [vmem:[#allocation8 + $0x3f0] sm:$0xff]
        %v517 = vld [vmem:[#allocation8 + $0x3f8] sm:$0xff]
        %v518 = vld [vmem:[#allocation8 + $0x400] sm:$0xff]
        %v519 = vld [vmem:[#allocation8 + $0x408] sm:$0xff]
        %v520 = vld [vmem:[#allocation8 + $0x410] sm:$0xff]
        %v521 = vld [vmem:[#allocation8 + $0x418] sm:$0xff]
        %v522 = vld [vmem:[#allocation8 + $0x420] sm:$0xff]
        %v523 = vld [vmem:[#allocation8 + $0x428] sm:$0xff]
        %v524 = vld [vmem:[#allocation8 + $0x430] sm:$0xff]
        %v525 = vld [vmem:[#allocation8 + $0x438] sm:$0xff]
        %v526 = vld [vmem:[#allocation8 + $0x440] sm:$0xff]
        %v527 = vld [vmem:[#allocation8 + $0x448] sm:$0xff]
        %v528 = vld [vmem:[#allocation8 + $0x450] sm:$0xff]
        %v529 = vld [vmem:[#allocation8 + $0x458] sm:$0xff]
        %v530 = vld [vmem:[#allocation8 + $0x460] sm:$0xff]
        %v531 = vld [vmem:[#allocation8 + $0x468] sm:$0xff]
        %v532 = vld [vmem:[#allocation8 + $0x470] sm:$0xff]
        %v533 = vld [vmem:[#allocation8 + $0x478] sm:$0xff]
        %v534 = vld [vmem:[#allocation8 + $0x480] sm:$0xff]
        %v535 = vld [vmem:[#allocation8 + $0x488] sm:$0xff]
        %v536 = vld [vmem:[#allocation8 + $0x490] sm:$0xff]
        %v537 = vld [vmem:[#allocation8 + $0x498] sm:$0xff]
        %v538 = vld [vmem:[#allocation8 + $0x4a0] sm:$0xff]
        %v539 = vld [vmem:[#allocation8 + $0x4a8] sm:$0xff]
        %v540 = vld [vmem:[#allocation8 + $0x4b0] sm:$0xff]
        %v541 = vld [vmem:[#allocation8 + $0x4b8] sm:$0xff]
        %v542 = vld [vmem:[#allocation8 + $0x4c0] sm:$0xff]
        %v543 = vld [vmem:[#allocation8 + $0x4c8] sm:$0xff]
        %v544 = vld [vmem:[#allocation8 + $0x4d0] sm:$0xff]
        %v545 = vld [vmem:[#allocation8 + $0x4d8] sm:$0xff]
        %v546 = vld [vmem:[#allocation8 + $0x4e0] sm:$0xff]
        %v547 = vld [vmem:[#allocation8 + $0x4e8] sm:$0xff]
        %v548 = vld [vmem:[#allocation8 + $0x4f0] sm:$0xff]
        %v549 = vld [vmem:[#allocation8 + $0x4f8] sm:$0xff]
        %vm550 = vcmask 261120
        %v552 = vsel %vm550, %v467, 0
        %v555 = vsel %vm550, %v469, 0
        %557 = vmatprep.subr.mxu0 %v471
        %558 = vmatpush1.msra.mxu0 %v470
        %559 = vmatprep.subr.mxu0 %v475
        %560 = vmatpush1.msra.mxu0 %v474
        %561 = vmatprep.subr.mxu0 %v479
        %562 = vmatpush1.msra.mxu0 %v478
        %563 = vmatprep.subr.mxu0 %v483
        %564 = vmatpush1.msra.mxu0 %v482
        %565 = vmatprep.subr.mxu0 %v487
        %566 = vmatpush1.msra.mxu0 %v486
        %567 = vmatprep.subr.mxu0 %v491
        %568 = vmatpush1.msra.mxu0 %v490
        %569 = vmatprep.subr.mxu0 %v495
        %570 = vmatpush1.msra.mxu0 %v494
        %571 = vmatprep.subr.mxu0 %v499
        %572 = vmatpush1.msra.mxu0 %v498
        %573 = vmatprep.subr.mxu0 %v503
        %574 = vmatpush1.msra.mxu0 %v502
        %575 = vmatprep.subr.mxu0 %v507
        %576 = vmatpush1.msra.mxu0 %v506
        %577 = vmatprep.subr.mxu0 %v511
        %578 = vmatpush1.msra.mxu0 %v510
        %579 = vmatprep.subr.mxu0 %v515
        %580 = vmatpush1.msra.mxu0 %v514
        %581 = vmatprep.subr.mxu0 %v519
        %582 = vmatpush1.msra.mxu0 %v518
        %583 = vmatprep.subr.mxu0 %v523
        %584 = vmatpush1.msra.mxu0 %v522
        %585 = vmatprep.subr.mxu0 %v527
        %586 = vmatpush1.msra.mxu0 %v526
        %587 = vmatprep.subr.mxu0 %v531
        %588 = vmatpush1.msra.mxu0 %v530
        %589 = vmatprep.subr.mxu0 %v535
        %590 = vmatpush1.msra.mxu0 %v534
        %591 = vmatprep.subr.mxu0 %v539
        %592 = vmatpush1.msra.mxu0 %v538
        %593 = vmatprep.subr.mxu0 %v543
        %594 = vmatpush1.msra.mxu0 %v542
        %595 = vmatprep.subr.mxu0 %v547
        %596 = vmatpush1.msra.mxu0 %v546
        %597 = vmatprep.subr.mxu0 0.0
        %598 = vmatpush1.msra.mxu0 0.0
        %599 = vmatprep.subr.mxu0 0.0
        %600 = vmatpush1.msra.mxu0 0.0
        %601 = vmatprep.subr.mxu0 0.0
        %602 = vmatpush1.msra.mxu0 0.0
        %603 = vmatprep.subr.mxu0 0.0
        %604 = vmatpush1.msra.mxu0 0.0
        %605 = vmatprep.subr.mxu0 0.0
        %606 = vmatpush1.msra.mxu0 0.0
        %607 = vmatprep.subr.mxu0 0.0
        %608 = vmatpush1.msra.mxu0 0.0
        %609 = vmatprep.subr.mxu0 0.0
        %610 = vmatpush1.msra.mxu0 0.0
        %611 = vmatprep.subr.mxu0 0.0
        %612 = vmatpush1.msra.mxu0 0.0
        %613 = vmatprep.subr.mxu0 0.0
        %614 = vmatpush1.msra.mxu0 0.0
        %615 = vmatprep.subr.mxu0 0.0
        %616 = vmatpush1.msra.mxu0 0.0
        %617 = vmatprep.subr.mxu0 0.0
        %618 = vmatpush1.msra.mxu0 0.0
        %619 = vmatprep.subr.mxu0 0.0
        %620 = vmatpush1.msra.mxu0 0.0
        %621 = vmatprep.mubr.f32.mxu0 %v552
        %622 = vmatmul.mubr.f32.gmra.mrb[0].mxu0 %v466
        %v623 = vpop.f32.mrb[0].mxu0
        %v624 = vadd.f32 0.0, %v623
        %v625 = vpop.f32.mrb[0].mxu0
        %v626 = vadd.f32 0.0, %v625
        %627 = vmatprep.mubr.f32.mxu0 %v555
        %628 = vmatmul.mubr.f32.gmra.mrb[0].mxu0 %v468
        %v629 = vpop.f32.mrb[0].mxu0
        %v630 = vadd.f32 0.0, %v629
        %v631 = vpop.f32.mrb[0].mxu0
        %v632 = vadd.f32 0.0, %v631
        %633 = vdwg.mxu0
        %634 = vmatprep.subr.mxu0 %v473
        %635 = vmatpush1.msra.mxu0 %v472
        %636 = vmatprep.subr.mxu0 %v477
        %637 = vmatpush1.msra.mxu0 %v476
        %638 = vmatprep.subr.mxu0 %v481
        %639 = vmatpush1.msra.mxu0 %v480
        %640 = vmatprep.subr.mxu0 %v485
        %641 = vmatpush1.msra.mxu0 %v484
        %642 = vmatprep.subr.mxu0 %v489
        %643 = vmatpush1.msra.mxu0 %v488
        %644 = vmatprep.subr.mxu0 %v493
        %645 = vmatpush1.msra.mxu0 %v492
        %646 = vmatprep.subr.mxu0 %v497
        %647 = vmatpush1.msra.mxu0 %v496
        %648 = vmatprep.subr.mxu0 %v501
        %649 = vmatpush1.msra.mxu0 %v500
        %650 = vmatprep.subr.mxu0 %v505
        %651 = vmatpush1.msra.mxu0 %v504
        %652 = vmatprep.subr.mxu0 %v509
        %653 = vmatpush1.msra.mxu0 %v508
        %654 = vmatprep.subr.mxu0 %v513
        %655 = vmatpush1.msra.mxu0 %v512
        %656 = vmatprep.subr.mxu0 %v517
        %657 = vmatpush1.msra.mxu0 %v516
        %658 = vmatprep.subr.mxu0 %v521
        %659 = vmatpush1.msra.mxu0 %v520
        %660 = vmatprep.subr.mxu0 %v525
        %661 = vmatpush1.msra.mxu0 %v524
        %662 = vmatprep.subr.mxu0 %v529
        %663 = vmatpush1.msra.mxu0 %v528
        %664 = vmatprep.subr.mxu0 %v533
        %665 = vmatpush1.msra.mxu0 %v532
        %666 = vmatprep.subr.mxu0 %v537
        %667 = vmatpush1.msra.mxu0 %v536
        %668 = vmatprep.subr.mxu0 %v541
        %669 = vmatpush1.msra.mxu0 %v540
        %670 = vmatprep.subr.mxu0 %v545
        %671 = vmatpush1.msra.mxu0 %v544
        %672 = vmatprep.subr.mxu0 %v549
        %673 = vmatpush1.msra.mxu0 %v548
        %674 = vmatprep.subr.mxu0 0.0
        %675 = vmatpush1.msra.mxu0 0.0
        %676 = vmatprep.subr.mxu0 0.0
        %677 = vmatpush1.msra.mxu0 0.0
        %678 = vmatprep.subr.mxu0 0.0
        %679 = vmatpush1.msra.mxu0 0.0
        %680 = vmatprep.subr.mxu0 0.0
        %681 = vmatpush1.msra.mxu0 0.0
        %682 = vmatprep.subr.mxu0 0.0
        %683 = vmatpush1.msra.mxu0 0.0
        %684 = vmatprep.subr.mxu0 0.0
        %685 = vmatpush1.msra.mxu0 0.0
        %686 = vmatprep.subr.mxu0 0.0
        %687 = vmatpush1.msra.mxu0 0.0
        %688 = vmatprep.subr.mxu0 0.0
        %689 = vmatpush1.msra.mxu0 0.0
        %690 = vmatprep.subr.mxu0 0.0
        %691 = vmatpush1.msra.mxu0 0.0
        %692 = vmatprep.subr.mxu0 0.0
        %693 = vmatpush1.msra.mxu0 0.0
        %694 = vmatprep.subr.mxu0 0.0
        %695 = vmatpush1.msra.mxu0 0.0
        %696 = vmatprep.subr.mxu0 0.0
        %697 = vmatpush1.msra.mxu0 0.0
        %698 = vmatprep.mubr.f32.mxu0 %v552
        %699 = vmatmul.mubr.f32.gmra.mrb[0].mxu0 %v466
        %v700 = vpop.f32.mrb[0].mxu0
        %v701 = vadd.f32 0.0, %v700
        %v702 = vpop.f32.mrb[0].mxu0
        %v703 = vadd.f32 0.0, %v702
        %704 = vmatprep.mubr.f32.mxu0 %v555
        %705 = vmatmul.mubr.f32.gmra.mrb[0].mxu0 %v468
        %v706 = vpop.f32.mrb[0].mxu0
        %v707 = vadd.f32 0.0, %v706
        %v708 = vpop.f32.mrb[0].mxu0
        %v709 = vadd.f32 0.0, %v708
        %710 = vdwg.mxu0
        %v712 = vsel %vm550, %v383, 0
        %v715 = vsel %vm550, %v385, 0
        %717 = vmatprep.subr.mxu0 %v387
        %718 = vmatpush1.msra.mxu0 %v386
        %719 = vmatprep.subr.mxu0 %v391
        %720 = vmatpush1.msra.mxu0 %v390
        %721 = vmatprep.subr.mxu0 %v395
        %722 = vmatpush1.msra.mxu0 %v394
        %723 = vmatprep.subr.mxu0 %v399
        %724 = vmatpush1.msra.mxu0 %v398
        %725 = vmatprep.subr.mxu0 %v403
        %726 = vmatpush1.msra.mxu0 %v402
        %727 = vmatprep.subr.mxu0 %v407
        %728 = vmatpush1.msra.mxu0 %v406
        %729 = vmatprep.subr.mxu0 %v411
        %730 = vmatpush1.msra.mxu0 %v410
        %731 = vmatprep.subr.mxu0 %v415
        %732 = vmatpush1.msra.mxu0 %v414
        %733 = vmatprep.subr.mxu0 %v419
        %734 = vmatpush1.msra.mxu0 %v418
        %735 = vmatprep.subr.mxu0 %v423
        %736 = vmatpush1.msra.mxu0 %v422
        %737 = vmatprep.subr.mxu0 %v427
        %738 = vmatpush1.msra.mxu0 %v426
        %739 = vmatprep.subr.mxu0 %v431
        %740 = vmatpush1.msra.mxu0 %v430
        %741 = vmatprep.subr.mxu0 %v435
        %742 = vmatpush1.msra.mxu0 %v434
        %743 = vmatprep.subr.mxu0 %v439
        %744 = vmatpush1.msra.mxu0 %v438
        %745 = vmatprep.subr.mxu0 %v443
        %746 = vmatpush1.msra.mxu0 %v442
        %747 = vmatprep.subr.mxu0 %v447
        %748 = vmatpush1.msra.mxu0 %v446
        %749 = vmatprep.subr.mxu0 %v451
        %750 = vmatpush1.msra.mxu0 %v450
        %751 = vmatprep.subr.mxu0 %v455
        %752 = vmatpush1.msra.mxu0 %v454
        %753 = vmatprep.subr.mxu0 %v459
        %754 = vmatpush1.msra.mxu0 %v458
        %755 = vmatprep.subr.mxu0 %v463
        %756 = vmatpush1.msra.mxu0 %v462
        %757 = vmatprep.subr.mxu0 0.0
        %758 = vmatpush1.msra.mxu0 0.0
        %759 = vmatprep.subr.mxu0 0.0
        %760 = vmatpush1.msra.mxu0 0.0
        %761 = vmatprep.subr.mxu0 0.0
        %762 = vmatpush1.msra.mxu0 0.0
        %763 = vmatprep.subr.mxu0 0.0
        %764 = vmatpush1.msra.mxu0 0.0
        %765 = vmatprep.subr.mxu0 0.0
        %766 = vmatpush1.msra.mxu0 0.0
        %767 = vmatprep.subr.mxu0 0.0
        %768 = vmatpush1.msra.mxu0 0.0
        %769 = vmatprep.subr.mxu0 0.0
        %770 = vmatpush1.msra.mxu0 0.0
        %771 = vmatprep.subr.mxu0 0.0
        %772 = vmatpush1.msra.mxu0 0.0
        %773 = vmatprep.subr.mxu0 0.0
        %774 = vmatpush1.msra.mxu0 0.0
        %775 = vmatprep.subr.mxu0 0.0
        %776 = vmatpush1.msra.mxu0 0.0
        %777 = vmatprep.subr.mxu0 0.0
        %778 = vmatpush1.msra.mxu0 0.0
        %779 = vmatprep.subr.mxu0 0.0
        %780 = vmatpush1.msra.mxu0 0.0
        %781 = vmatprep.mubr.f32.mxu0 %v712
        %782 = vmatmul.mubr.f32.gmra.mrb[0].mxu0 %v382
        %v783 = vpop.f32.mrb[0].mxu0
        %v784 = vadd.f32 %v624, %v783
        %v785 = vpop.f32.mrb[0].mxu0
        %v786 = vadd.f32 %v626, %v785
        %787 = vmatprep.mubr.f32.mxu0 %v715
        %788 = vmatmul.mubr.f32.gmra.mrb[0].mxu0 %v384
        %v789 = vpop.f32.mrb[0].mxu0
        %v790 = vadd.f32 %v630, %v789
        %v791 = vpop.f32.mrb[0].mxu0
        %v792 = vadd.f32 %v632, %v791
        %793 = vdwg.mxu0
        %794 = vmatprep.subr.mxu0 %v389
        %795 = vmatpush1.msra.mxu0 %v388
        %796 = vmatprep.subr.mxu0 %v393
        %797 = vmatpush1.msra.mxu0 %v392
        %798 = vmatprep.subr.mxu0 %v397
        %799 = vmatpush1.msra.mxu0 %v396
        %800 = vmatprep.subr.mxu0 %v401
        %801 = vmatpush1.msra.mxu0 %v400
        %802 = vmatprep.subr.mxu0 %v405
        %803 = vmatpush1.msra.mxu0 %v404
        %804 = vmatprep.subr.mxu0 %v409
        %805 = vmatpush1.msra.mxu0 %v408
        %806 = vmatprep.subr.mxu0 %v413
        %807 = vmatpush1.msra.mxu0 %v412
        %808 = vmatprep.subr.mxu0 %v417
        %809 = vmatpush1.msra.mxu0 %v416
        %810 = vmatprep.subr.mxu0 %v421
        %811 = vmatpush1.msra.mxu0 %v420
        %812 = vmatprep.subr.mxu0 %v425
        %813 = vmatpush1.msra.mxu0 %v424
        %814 = vmatprep.subr.mxu0 %v429
        %815 = vmatpush1.msra.mxu0 %v428
        %816 = vmatprep.subr.mxu0 %v433
        %817 = vmatpush1.msra.mxu0 %v432
        %818 = vmatprep.subr.mxu0 %v437
        %819 = vmatpush1.msra.mxu0 %v436
        %820 = vmatprep.subr.mxu0 %v441
        %821 = vmatpush1.msra.mxu0 %v440
        %822 = vmatprep.subr.mxu0 %v445
        %823 = vmatpush1.msra.mxu0 %v444
        %824 = vmatprep.subr.mxu0 %v449
        %825 = vmatpush1.msra.mxu0 %v448
        %826 = vmatprep.subr.mxu0 %v453
        %827 = vmatpush1.msra.mxu0 %v452
        %828 = vmatprep.subr.mxu0 %v457
        %829 = vmatpush1.msra.mxu0 %v456
        %830 = vmatprep.subr.mxu0 %v461
        %831 = vmatpush1.msra.mxu0 %v460
        %832 = vmatprep.subr.mxu0 %v465
        %833 = vmatpush1.msra.mxu0 %v464
        %834 = vmatprep.subr.mxu0 0.0
        %835 = vmatpush1.msra.mxu0 0.0
        %836 = vmatprep.subr.mxu0 0.0
        %837 = vmatpush1.msra.mxu0 0.0
        %838 = vmatprep.subr.mxu0 0.0
        %839 = vmatpush1.msra.mxu0 0.0
        %840 = vmatprep.subr.mxu0 0.0
        %841 = vmatpush1.msra.mxu0 0.0
        %842 = vmatprep.subr.mxu0 0.0
        %843 = vmatpush1.msra.mxu0 0.0
        %844 = vmatprep.subr.mxu0 0.0
        %845 = vmatpush1.msra.mxu0 0.0
        %846 = vmatprep.subr.mxu0 0.0
        %847 = vmatpush1.msra.mxu0 0.0
        %848 = vmatprep.subr.mxu0 0.0
        %849 = vmatpush1.msra.mxu0 0.0
        %850 = vmatprep.subr.mxu0 0.0
        %851 = vmatpush1.msra.mxu0 0.0
        %852 = vmatprep.subr.mxu0 0.0
        %853 = vmatpush1.msra.mxu0 0.0
        %854 = vmatprep.subr.mxu0 0.0
        %855 = vmatpush1.msra.mxu0 0.0
        %856 = vmatprep.subr.mxu0 0.0
        %857 = vmatpush1.msra.mxu0 0.0
        %858 = vmatprep.mubr.f32.mxu0 %v712
        %859 = vmatmul.mubr.f32.gmra.mrb[0].mxu0 %v382
        %v860 = vpop.f32.mrb[0].mxu0
        %v861 = vadd.f32 %v701, %v860
        %v862 = vpop.f32.mrb[0].mxu0
        %v863 = vadd.f32 %v703, %v862
        %864 = vmatprep.mubr.f32.mxu0 %v715
        %865 = vmatmul.mubr.f32.gmra.mrb[0].mxu0 %v384
        %v866 = vpop.f32.mrb[0].mxu0
        %v867 = vadd.f32 %v707, %v866
        %v868 = vpop.f32.mrb[0].mxu0
        %v869 = vadd.f32 %v709, %v868
        %870 = vdwg.mxu0
        %v871 = vld [vmem:[%s333] sm:$0xff]
        %v872 = vld [vmem:[%s333 + $0x8] sm:$0xff]
        %v873 = vld [vmem:[%s333 + $0x10] sm:$0xff]
        %v874 = vld [vmem:[%s333 + $0x18] sm:$0xff]
        %v875 = vld [vmem:[#allocation8 + $0x500] sm:$0xff]
        %v876 = vld [vmem:[#allocation8 + $0x508] sm:$0xff]
        %v877 = vld [vmem:[#allocation8 + $0x510] sm:$0xff]
        %v878 = vld [vmem:[#allocation8 + $0x518] sm:$0xff]
        %v879 = vld [vmem:[#allocation8 + $0x520] sm:$0xff]
        %v880 = vld [vmem:[#allocation8 + $0x528] sm:$0xff]
        %v881 = vld [vmem:[#allocation8 + $0x530] sm:$0xff]
        %v882 = vld [vmem:[#allocation8 + $0x538] sm:$0xff]
        %v883 = vld [vmem:[#allocation8 + $0x540] sm:$0xff]
        %v884 = vld [vmem:[#allocation8 + $0x548] sm:$0xff]
        %v885 = vld [vmem:[#allocation8 + $0x550] sm:$0xff]
        %v886 = vld [vmem:[#allocation8 + $0x558] sm:$0xff]
        %v887 = vld [vmem:[#allocation8 + $0x560] sm:$0xff]
        %v888 = vld [vmem:[#allocation8 + $0x568] sm:$0xff]
        %v889 = vld [vmem:[#allocation8 + $0x570] sm:$0xff]
        %v890 = vld [vmem:[#allocation8 + $0x578] sm:$0xff]
        %v891 = vld [vmem:[#allocation8 + $0x580] sm:$0xff]
        %v892 = vld [vmem:[#allocation8 + $0x588] sm:$0xff]
        %v893 = vld [vmem:[#allocation8 + $0x590] sm:$0xff]
        %v894 = vld [vmem:[#allocation8 + $0x598] sm:$0xff]
        %v895 = vld [vmem:[#allocation8 + $0x5a0] sm:$0xff]
        %v896 = vld [vmem:[#allocation8 + $0x5a8] sm:$0xff]
        %v897 = vld [vmem:[#allocation8 + $0x5b0] sm:$0xff]
        %v898 = vld [vmem:[#allocation8 + $0x5b8] sm:$0xff]
        %v899 = vld [vmem:[#allocation8 + $0x5c0] sm:$0xff]
        %v900 = vld [vmem:[#allocation8 + $0x5c8] sm:$0xff]
        %v901 = vld [vmem:[#allocation8 + $0x5d0] sm:$0xff]
        %v902 = vld [vmem:[#allocation8 + $0x5d8] sm:$0xff]
        %v903 = vld [vmem:[#allocation8 + $0x5e0] sm:$0xff]
        %v904 = vld [vmem:[#allocation8 + $0x5e8] sm:$0xff]
        %v905 = vld [vmem:[#allocation8 + $0x5f0] sm:$0xff]
        %v906 = vld [vmem:[#allocation8 + $0x5f8] sm:$0xff]
        %v907 = vld [vmem:[#allocation8 + $0x600] sm:$0xff]
        %v908 = vld [vmem:[#allocation8 + $0x608] sm:$0xff]
        %v909 = vld [vmem:[#allocation8 + $0x610] sm:$0xff]
        %v910 = vld [vmem:[#allocation8 + $0x618] sm:$0xff]
        %v911 = vld [vmem:[#allocation8 + $0x620] sm:$0xff]
        %v912 = vld [vmem:[#allocation8 + $0x628] sm:$0xff]
        %v913 = vld [vmem:[#allocation8 + $0x630] sm:$0xff]
        %v914 = vld [vmem:[#allocation8 + $0x638] sm:$0xff]
        %v915 = vld [vmem:[#allocation8 + $0x640] sm:$0xff]
        %v916 = vld [vmem:[#allocation8 + $0x648] sm:$0xff]
        %v917 = vld [vmem:[#allocation8 + $0x650] sm:$0xff]
        %v918 = vld [vmem:[#allocation8 + $0x658] sm:$0xff]
        %v919 = vld [vmem:[#allocation8 + $0x660] sm:$0xff]
        %v920 = vld [vmem:[#allocation8 + $0x668] sm:$0xff]
        %v921 = vld [vmem:[#allocation8 + $0x670] sm:$0xff]
        %v922 = vld [vmem:[#allocation8 + $0x678] sm:$0xff]
        %v923 = vld [vmem:[#allocation8 + $0x680] sm:$0xff]
        %v924 = vld [vmem:[#allocation8 + $0x688] sm:$0xff]
        %v925 = vld [vmem:[#allocation8 + $0x690] sm:$0xff]
        %v926 = vld [vmem:[#allocation8 + $0x698] sm:$0xff]
        %v927 = vld [vmem:[#allocation8 + $0x6a0] sm:$0xff]
        %v928 = vld [vmem:[#allocation8 + $0x6a8] sm:$0xff]
        %v929 = vld [vmem:[#allocation8 + $0x6b0] sm:$0xff]
        %v930 = vld [vmem:[#allocation8 + $0x6b8] sm:$0xff]
        %v931 = vld [vmem:[#allocation8 + $0x6c0] sm:$0xff]
        %v932 = vld [vmem:[#allocation8 + $0x6c8] sm:$0xff]
        %v933 = vld [vmem:[#allocation8 + $0x6d0] sm:$0xff]
        %v934 = vld [vmem:[#allocation8 + $0x6d8] sm:$0xff]
        %v935 = vld [vmem:[#allocation8 + $0x6e0] sm:$0xff]
        %v936 = vld [vmem:[#allocation8 + $0x6e8] sm:$0xff]
        %v937 = vld [vmem:[#allocation8 + $0x6f0] sm:$0xff]
        %v938 = vld [vmem:[#allocation8 + $0x6f8] sm:$0xff]
        %v939 = vld [vmem:[#allocation8 + $0x700] sm:$0xff]
        %v940 = vld [vmem:[#allocation8 + $0x708] sm:$0xff]
        %v941 = vld [vmem:[#allocation8 + $0x710] sm:$0xff]
        %v942 = vld [vmem:[#allocation8 + $0x718] sm:$0xff]
        %v943 = vld [vmem:[#allocation8 + $0x720] sm:$0xff]
        %v944 = vld [vmem:[#allocation8 + $0x728] sm:$0xff]
        %v945 = vld [vmem:[#allocation8 + $0x730] sm:$0xff]
        %v946 = vld [vmem:[#allocation8 + $0x738] sm:$0xff]
        %v947 = vld [vmem:[#allocation8 + $0x740] sm:$0xff]
        %v948 = vld [vmem:[#allocation8 + $0x748] sm:$0xff]
        %v949 = vld [vmem:[#allocation8 + $0x750] sm:$0xff]
        %v950 = vld [vmem:[#allocation8 + $0x758] sm:$0xff]
        %v951 = vld [vmem:[#allocation8 + $0x760] sm:$0xff]
        %v952 = vld [vmem:[#allocation8 + $0x768] sm:$0xff]
        %v953 = vld [vmem:[#allocation8 + $0x770] sm:$0xff]
        %v954 = vld [vmem:[#allocation8 + $0x778] sm:$0xff]
        %v956 = vsel %vm550, %v872, 0
        %v959 = vsel %vm550, %v874, 0
        %961 = vmatprep.subr.mxu0 %v876
        %962 = vmatpush1.msra.mxu0 %v875
        %963 = vmatprep.subr.mxu0 %v880
        %964 = vmatpush1.msra.mxu0 %v879
        %965 = vmatprep.subr.mxu0 %v884
        %966 = vmatpush1.msra.mxu0 %v883
        %967 = vmatprep.subr.mxu0 %v888
        %968 = vmatpush1.msra.mxu0 %v887
        %969 = vmatprep.subr.mxu0 %v892
        %970 = vmatpush1.msra.mxu0 %v891
        %971 = vmatprep.subr.mxu0 %v896
        %972 = vmatpush1.msra.mxu0 %v895
        %973 = vmatprep.subr.mxu0 %v900
        %974 = vmatpush1.msra.mxu0 %v899
        %975 = vmatprep.subr.mxu0 %v904
        %976 = vmatpush1.msra.mxu0 %v903
        %977 = vmatprep.subr.mxu0 %v908
        %978 = vmatpush1.msra.mxu0 %v907
        %979 = vmatprep.subr.mxu0 %v912
        %980 = vmatpush1.msra.mxu0 %v911
        %981 = vmatprep.subr.mxu0 %v916
        %982 = vmatpush1.msra.mxu0 %v915
        %983 = vmatprep.subr.mxu0 %v920
        %984 = vmatpush1.msra.mxu0 %v919
        %985 = vmatprep.subr.mxu0 %v924
        %986 = vmatpush1.msra.mxu0 %v923
        %987 = vmatprep.subr.mxu0 %v928
        %988 = vmatpush1.msra.mxu0 %v927
        %989 = vmatprep.subr.mxu0 %v932
        %990 = vmatpush1.msra.mxu0 %v931
        %991 = vmatprep.subr.mxu0 %v936
        %992 = vmatpush1.msra.mxu0 %v935
        %993 = vmatprep.subr.mxu0 %v940
        %994 = vmatpush1.msra.mxu0 %v939
        %995 = vmatprep.subr.mxu0 %v944
        %996 = vmatpush1.msra.mxu0 %v943
        %997 = vmatprep.subr.mxu0 %v948
        %998 = vmatpush1.msra.mxu0 %v947
        %999 = vmatprep.subr.mxu0 %v952
        %1000 = vmatpush1.msra.mxu0 %v951
        %1001 = vmatprep.subr.mxu0 0.0
        %1002 = vmatpush1.msra.mxu0 0.0
        %1003 = vmatprep.subr.mxu0 0.0
        %1004 = vmatpush1.msra.mxu0 0.0
        %1005 = vmatprep.subr.mxu0 0.0
        %1006 = vmatpush1.msra.mxu0 0.0
        %1007 = vmatprep.subr.mxu0 0.0
        %1008 = vmatpush1.msra.mxu0 0.0
        %1009 = vmatprep.subr.mxu0 0.0
        %1010 = vmatpush1.msra.mxu0 0.0
        %1011 = vmatprep.subr.mxu0 0.0
        %1012 = vmatpush1.msra.mxu0 0.0
        %1013 = vmatprep.subr.mxu0 0.0
        %1014 = vmatpush1.msra.mxu0 0.0
        %1015 = vmatprep.subr.mxu0 0.0
        %1016 = vmatpush1.msra.mxu0 0.0
        %1017 = vmatprep.subr.mxu0 0.0
        %1018 = vmatpush1.msra.mxu0 0.0
        %1019 = vmatprep.subr.mxu0 0.0
        %1020 = vmatpush1.msra.mxu0 0.0
        %1021 = vmatprep.subr.mxu0 0.0
        %1022 = vmatpush1.msra.mxu0 0.0
        %1023 = vmatprep.subr.mxu0 0.0
        %1024 = vmatpush1.msra.mxu0 0.0
        %1025 = vmatprep.mubr.f32.mxu0 %v956
        %1026 = vmatmul.mubr.f32.gmra.mrb[0].mxu0 %v871
        %v1027 = vpop.f32.mrb[0].mxu0
        %v1028 = vadd.f32 0.0, %v1027
        %v1029 = vpop.f32.mrb[0].mxu0
        %v1030 = vadd.f32 0.0, %v1029
        %1031 = vmatprep.mubr.f32.mxu0 %v959
        %1032 = vmatmul.mubr.f32.gmra.mrb[0].mxu0 %v873
        %v1033 = vpop.f32.mrb[0].mxu0
        %v1034 = vadd.f32 0.0, %v1033
        %v1035 = vpop.f32.mrb[0].mxu0
        %v1036 = vadd.f32 0.0, %v1035
        %1037 = vdwg.mxu0
        %1038 = vmatprep.subr.mxu0 %v878
        %1039 = vmatpush1.msra.mxu0 %v877
        %1040 = vmatprep.subr.mxu0 %v882
        %1041 = vmatpush1.msra.mxu0 %v881
        %1042 = vmatprep.subr.mxu0 %v886
        %1043 = vmatpush1.msra.mxu0 %v885
        %1044 = vmatprep.subr.mxu0 %v890
        %1045 = vmatpush1.msra.mxu0 %v889
        %1046 = vmatprep.subr.mxu0 %v894
        %1047 = vmatpush1.msra.mxu0 %v893
        %1048 = vmatprep.subr.mxu0 %v898
        %1049 = vmatpush1.msra.mxu0 %v897
        %1050 = vmatprep.subr.mxu0 %v902
        %1051 = vmatpush1.msra.mxu0 %v901
        %1052 = vmatprep.subr.mxu0 %v906
        %1053 = vmatpush1.msra.mxu0 %v905
        %1054 = vmatprep.subr.mxu0 %v910
        %1055 = vmatpush1.msra.mxu0 %v909
        %1056 = vmatprep.subr.mxu0 %v914
        %1057 = vmatpush1.msra.mxu0 %v913
        %1058 = vmatprep.subr.mxu0 %v918
        %1059 = vmatpush1.msra.mxu0 %v917
        %1060 = vmatprep.subr.mxu0 %v922
        %1061 = vmatpush1.msra.mxu0 %v921
        %1062 = vmatprep.subr.mxu0 %v926
        %1063 = vmatpush1.msra.mxu0 %v925
        %1064 = vmatprep.subr.mxu0 %v930
        %1065 = vmatpush1.msra.mxu0 %v929
        %1066 = vmatprep.subr.mxu0 %v934
        %1067 = vmatpush1.msra.mxu0 %v933
        %1068 = vmatprep.subr.mxu0 %v938
        %1069 = vmatpush1.msra.mxu0 %v937
        %1070 = vmatprep.subr.mxu0 %v942
        %1071 = vmatpush1.msra.mxu0 %v941
        %1072 = vmatprep.subr.mxu0 %v946
        %1073 = vmatpush1.msra.mxu0 %v945
        %1074 = vmatprep.subr.mxu0 %v950
        %1075 = vmatpush1.msra.mxu0 %v949
        %1076 = vmatprep.subr.mxu0 %v954
        %1077 = vmatpush1.msra.mxu0 %v953
        %1078 = vmatprep.subr.mxu0 0.0
        %1079 = vmatpush1.msra.mxu0 0.0
        %1080 = vmatprep.subr.mxu0 0.0
        %1081 = vmatpush1.msra.mxu0 0.0
        %1082 = vmatprep.subr.mxu0 0.0
        %1083 = vmatpush1.msra.mxu0 0.0
        %1084 = vmatprep.subr.mxu0 0.0
        %1085 = vmatpush1.msra.mxu0 0.0
        %1086 = vmatprep.subr.mxu0 0.0
        %1087 = vmatpush1.msra.mxu0 0.0
        %1088 = vmatprep.subr.mxu0 0.0
        %1089 = vmatpush1.msra.mxu0 0.0
        %1090 = vmatprep.subr.mxu0 0.0
        %1091 = vmatpush1.msra.mxu0 0.0
        %1092 = vmatprep.subr.mxu0 0.0
        %1093 = vmatpush1.msra.mxu0 0.0
        %1094 = vmatprep.subr.mxu0 0.0
        %1095 = vmatpush1.msra.mxu0 0.0
        %1096 = vmatprep.subr.mxu0 0.0
        %1097 = vmatpush1.msra.mxu0 0.0
        %1098 = vmatprep.subr.mxu0 0.0
        %1099 = vmatpush1.msra.mxu0 0.0
        %1100 = vmatprep.subr.mxu0 0.0
        %1101 = vmatpush1.msra.mxu0 0.0
        %1102 = vmatprep.mubr.f32.mxu0 %v956
        %1103 = vmatmul.mubr.f32.gmra.mrb[0].mxu0 %v871
        %v1104 = vpop.f32.mrb[0].mxu0
        %v1105 = vadd.f32 0.0, %v1104
        %v1106 = vpop.f32.mrb[0].mxu0
        %v1107 = vadd.f32 0.0, %v1106
        %1108 = vmatprep.mubr.f32.mxu0 %v959
        %1109 = vmatmul.mubr.f32.gmra.mrb[0].mxu0 %v873
        %v1110 = vpop.f32.mrb[0].mxu0
        %v1111 = vadd.f32 0.0, %v1110
        %v1112 = vpop.f32.mrb[0].mxu0
        %v1113 = vadd.f32 0.0, %v1112
        %1114 = vdwg.mxu0
        %v1115 = vadd.f32 %v784, %v1028
        %v1116 = vadd.f32 %v786, %v1030
        %v1117 = vadd.f32 %v861, %v1105
        %v1118 = vadd.f32 %v863, %v1107
        %v1119 = vadd.f32 %v790, %v1034
        %v1120 = vadd.f32 %v792, %v1036
        %v1121 = vadd.f32 %v867, %v1111
        %v1122 = vadd.f32 %v869, %v1113
        %v1123 = vmul.f32 %v1115, %v1115
        %v1124 = vmul.f32 %v1116, %v1116
        %v1125 = vmul.f32 %v1119, %v1119
        %v1126 = vmul.f32 %v1120, %v1120
        %v1127 = vmul.f32 %v1117, %v1117
        %v1128 = vmul.f32 %v1118, %v1118
        %v1129 = vmul.f32 %v1121, %v1121
        %v1130 = vmul.f32 %v1122, %v1122
        %v1131 = vadd.f32 %v1123, %v1127
        %v1132 = vadd.f32 %v1124, %v1128
        %v1133 = vadd.f32 %v1125, %v1129
        %v1134 = vadd.f32 %v1126, %v1130
        %v1135 = vrsqrt.pop %v1131
        %v1136 = vmul.f32 %v1131, %v1135
        %vm1137 = vcmp.eq.f32.partialorder %v1131, inf
        %v1138 = vsel %vm1137, %v1131, %v1136
        %vm1139 = vcmp.eq.f32.partialorder %v1131, 0.0
        %v1140 = vand.u32 %v1131, 2147483648
        %v1141 = vsel %vm1139, %v1140, %v1138
        %v1142 = vrsqrt.pop %v1132
        %v1143 = vmul.f32 %v1132, %v1142
        %vm1144 = vcmp.eq.f32.partialorder %v1132, inf
        %v1145 = vsel %vm1144, %v1132, %v1143
        %vm1146 = vcmp.eq.f32.partialorder %v1132, 0.0
        %v1147 = vand.u32 %v1132, 2147483648
        %v1148 = vsel %vm1146, %v1147, %v1145
        %v1149 = vrsqrt.pop %v1133
        %v1150 = vmul.f32 %v1133, %v1149
        %vm1151 = vcmp.eq.f32.partialorder %v1133, inf
        %v1152 = vsel %vm1151, %v1133, %v1150
        %vm1153 = vcmp.eq.f32.partialorder %v1133, 0.0
        %v1154 = vand.u32 %v1133, 2147483648
        %v1155 = vsel %vm1153, %v1154, %v1152
        %v1156 = vrsqrt.pop %v1134
        %v1157 = vmul.f32 %v1134, %v1156
        %vm1158 = vcmp.eq.f32.partialorder %v1134, inf
        %v1159 = vsel %vm1158, %v1134, %v1157
        %vm1160 = vcmp.eq.f32.partialorder %v1134, 0.0
        %v1161 = vand.u32 %v1134, 2147483648
        %v1162 = vsel %vm1160, %v1161, %v1159
        %v1163 = vld [vmem:[#allocation10] sm:$0xff]
        %v1164 = vld [vmem:[#allocation10 + $0x8] sm:$0xff]
        %v1165 = vld [vmem:[#allocation10 + $0x10] sm:$0xff]
        %v1166 = vld [vmem:[#allocation10 + $0x18] sm:$0xff]
        %v1167 = vld [vmem:[#allocation10 + $0x20] sm:$0xff]
        %v1168 = vld [vmem:[#allocation10 + $0x28] sm:$0xff]
        %v1169 = vld [vmem:[#allocation10 + $0x30] sm:$0xff]
        %v1170 = vld [vmem:[#allocation10 + $0x38] sm:$0xff]
        %v1171 = vld [vmem:[#allocation10 + $0x40] sm:$0xff]
        %v1172 = vld [vmem:[#allocation10 + $0x48] sm:$0xff]
        %v1173 = vld [vmem:[#allocation10 + $0x50] sm:$0xff]
        %v1174 = vld [vmem:[#allocation10 + $0x58] sm:$0xff]
        %v1175 = vld [vmem:[#allocation10 + $0x60] sm:$0xff]
        %v1176 = vld [vmem:[#allocation10 + $0x68] sm:$0xff]
        %v1177 = vld [vmem:[#allocation10 + $0x70] sm:$0xff]
        %v1178 = vld [vmem:[#allocation10 + $0x78] sm:$0xff]
        %v1179 = vld [vmem:[#allocation10 + $0x80] sm:$0xff]
        %v1180 = vld [vmem:[#allocation10 + $0x88] sm:$0xff]
        %v1181 = vld [vmem:[#allocation10 + $0x90] sm:$0xff]
        %v1182 = vld [vmem:[#allocation10 + $0x98] sm:$0xff]
        %v1183 = vld [vmem:[#allocation10 + $0xa0] sm:$0xff]
        %v1184 = vld [vmem:[#allocation10 + $0xa8] sm:$0xff]
        %v1185 = vld [vmem:[#allocation10 + $0xb0] sm:$0xff]
        %v1186 = vld [vmem:[#allocation10 + $0xb8] sm:$0xff]
        %v1187 = vld [vmem:[#allocation10 + $0xc0] sm:$0xff]
        %v1188 = vld [vmem:[#allocation10 + $0xc8] sm:$0xff]
        %v1189 = vld [vmem:[#allocation10 + $0xd0] sm:$0xff]
        %v1190 = vld [vmem:[#allocation10 + $0xd8] sm:$0xff]
        %v1191 = vld [vmem:[#allocation10 + $0xe0] sm:$0xff]
        %v1192 = vld [vmem:[#allocation10 + $0xe8] sm:$0xff]
        %v1193 = vld [vmem:[#allocation10 + $0xf0] sm:$0xff]
        %v1194 = vld [vmem:[#allocation10 + $0xf8] sm:$0xff]
        %1195 = vmatprep.subr.mxu0 0.0
        %1196 = vmatpush1.msra.mxu0 %v1163
        %1197 = vmatprep.subr.mxu0 0.0
        %1198 = vmatpush1.msra.mxu0 %v1164
        %1199 = vmatprep.subr.mxu0 0.0
        %1200 = vmatpush1.msra.mxu0 %v1165
        %1201 = vmatprep.subr.mxu0 0.0
        %1202 = vmatpush1.msra.mxu0 %v1166
        %1203 = vmatprep.subr.mxu0 0.0
        %1204 = vmatpush1.msra.mxu0 %v1167
        %1205 = vmatprep.subr.mxu0 0.0
        %1206 = vmatpush1.msra.mxu0 %v1168
        %1207 = vmatprep.subr.mxu0 0.0
        %1208 = vmatpush1.msra.mxu0 %v1169
        %1209 = vmatprep.subr.mxu0 0.0
        %1210 = vmatpush1.msra.mxu0 %v1170
        %1211 = vmatprep.subr.mxu0 0.0
        %1212 = vmatpush1.msra.mxu0 %v1171
        %1213 = vmatprep.subr.mxu0 0.0
        %1214 = vmatpush1.msra.mxu0 %v1172
        %1215 = vmatprep.subr.mxu0 0.0
        %1216 = vmatpush1.msra.mxu0 %v1173
        %1217 = vmatprep.subr.mxu0 0.0
        %1218 = vmatpush1.msra.mxu0 %v1174
        %1219 = vmatprep.subr.mxu0 0.0
        %1220 = vmatpush1.msra.mxu0 %v1175
        %1221 = vmatprep.subr.mxu0 0.0
        %1222 = vmatpush1.msra.mxu0 %v1176
        %1223 = vmatprep.subr.mxu0 0.0
        %1224 = vmatpush1.msra.mxu0 %v1177
        %1225 = vmatprep.subr.mxu0 0.0
        %1226 = vmatpush1.msra.mxu0 %v1178
        %1227 = vmatprep.subr.mxu0 0.0
        %1228 = vmatpush1.msra.mxu0 %v1179
        %1229 = vmatprep.subr.mxu0 0.0
        %1230 = vmatpush1.msra.mxu0 %v1180
        %1231 = vmatprep.subr.mxu0 0.0
        %1232 = vmatpush1.msra.mxu0 %v1181
        %1233 = vmatprep.subr.mxu0 0.0
        %1234 = vmatpush1.msra.mxu0 %v1182
        %1235 = vmatprep.subr.mxu0 0.0
        %1236 = vmatpush1.msra.mxu0 %v1183
        %1237 = vmatprep.subr.mxu0 0.0
        %1238 = vmatpush1.msra.mxu0 %v1184
        %1239 = vmatprep.subr.mxu0 0.0
        %1240 = vmatpush1.msra.mxu0 %v1185
        %1241 = vmatprep.subr.mxu0 0.0
        %1242 = vmatpush1.msra.mxu0 %v1186
        %1243 = vmatprep.subr.mxu0 0.0
        %1244 = vmatpush1.msra.mxu0 %v1187
        %1245 = vmatprep.subr.mxu0 0.0
        %1246 = vmatpush1.msra.mxu0 %v1188
        %1247 = vmatprep.subr.mxu0 0.0
        %1248 = vmatpush1.msra.mxu0 %v1189
        %1249 = vmatprep.subr.mxu0 0.0
        %1250 = vmatpush1.msra.mxu0 %v1190
        %1251 = vmatprep.subr.mxu0 0.0
        %1252 = vmatpush1.msra.mxu0 %v1191
        %1253 = vmatprep.subr.mxu0 0.0
        %1254 = vmatpush1.msra.mxu0 %v1192
        %1255 = vmatprep.subr.mxu0 0.0
        %1256 = vmatpush1.msra.mxu0 %v1193
        %1257 = vmatprep.subr.mxu0 0.0
        %1258 = vmatpush1.msra.mxu0 %v1194
        %1259 = vmatprep.mubr.f32.mxu0 %v1148
        %1260 = vmatmul.mubr.f32.gmra.mrb[0].mxu0 %v1141
        %v1261 = vpop.f32.mrb[0].mxu0
        %v1262 = vadd.f32 0.0, %v1261
        %v1263 = vpop.f32.mrb[0].mxu0
        %1264 = vmatprep.mubr.f32.mxu0 %v1162
        %1265 = vmatmul.mubr.f32.gmra.mrb[0].mxu0 %v1155
        %v1266 = vpop.f32.mrb[0].mxu0
        %v1267 = vadd.f32 0.0, %v1266
        %v1268 = vpop.f32.mrb[0].mxu0
        %1269 = vdwg.mxu0
        %v1270 = vmul.f32 %v1262, %v1262
        %v1271 = vmul.f32 %v1267, %v1267
        %v1272 = vadd.f32 %v1270, 1e-08
        %v1273 = vadd.f32 %v1271, 1e-08
        %v1274 = vlog2.pop %v1272
        %v1275 = vmul.f32 %v1274, 0.6931472
        %v1276 = vlog2.pop %v1273
        %v1277 = vmul.f32 %v1276, 0.6931472
        %v1278 = vmul.f32 %v1275, 4.3429446
        %v1279 = vmul.f32 %v1277, 4.3429446
        %1280 = vst [vmem:[%s377] sm:$0xff] %v1278
        %1281 = vst [vmem:[%s377 + $0x8] sm:$0xff] %v1279
        %s1282 = sand.u32 %s174, 1
        %s1283 = scalar_lea.sflag [#allocation4], %s1282
        %s1284 = sand.u32 %s174, 1
        %s1285 = smul.addr %s1284, 16
        %s1286 = scalar_lea.vmem [#allocation11], %s1285
        // Predicated region
        $region61: #{tpu_custom_call.1} parent=39 // pred_check
          %p1287 = pneg %p184
        $region62: #{tpu_custom_call.1} parent=39 // pred_check_branch
          %1289 = sbr.rel (%p1287) target = $region64
        $region63: #{tpu_custom_call.1} parent=39 // pred_region
          %s1290 = smul.u32 2, %s31
          %s1292 = ssub.s32 256, 256
          %1293 = vsyncadd %s1283, %s1292
          %s1294 = smul.addr %s30, 2
          %s1295 = sadd.s32 %s1290, %s1294
          %s1296 = smul.addr %s1295, 128
          %s1297 = scalar_lea.hbm %s5, %s1296
          %s1298 = sshll.u32 %s1286, 4
          %s1299 = int_to_ptr.vmem [resolvable:$true] %s1298
          %1304 = dma.vmem_to_hbm [thread:$0]  %s1299, 256, %s1297, %s1283, 128, 128, 8
        $region64: #{tpu_custom_call.1} parent=39 // pred_fallthru
          _
      $region40: #{tpu_custom_call.1} parent=5 // pred_fallthru
        _
      %p1305 = scmp.le.s32.totalorder 2, %s21
      // Predicated region
      $region65: #{tpu_custom_call.1} parent=5 // pred_check
        %p1306 = pneg %p1305
      $region66: #{tpu_custom_call.1} parent=5 // pred_check_branch
        %1308 = sbr.rel (%p1306) target = $region68
      $region67: #{tpu_custom_call.1} parent=5 // pred_region
        %s1309 = ssub.s32 %s21, 2
        // Predicated region
        $region69: #{tpu_custom_call.1} parent=67 // pred_check
          %p1310 = pneg %p190
        $region70: #{tpu_custom_call.1} parent=67 // pred_check_branch
          %1312 = sbr.rel (%p1310) target = $region72
        $region71: #{tpu_custom_call.1} parent=67 // pred_region
          %s1313 = sand.u32 %s175, 1
          %s1314 = scalar_lea.sflag [#allocation4], %s1313
          %s1315 = sand.u32 %s175, 1
          %s1316 = smul.addr %s1315, 16
          %s1317 = scalar_lea.vmem [#allocation11], %s1316
          %1318 = dma.done %s1314, 256
        $region72: #{tpu_custom_call.1} parent=67 // pred_fallthru
          _
      $region68: #{tpu_custom_call.1} parent=5 // pred_fallthru
        _
    $region6: #{tpu_custom_call.1} parent=1 // loop_footer
      %s25 = sadd.s32 1, %s21
    $region7: #{tpu_custom_call.1} parent=1 // loop_footer_branch
      %20 = sbr.rel target = $region3
    $region8: #{tpu_custom_call.1} parent=1 // loop_exit
      _
    %1319 = vsyncpa [#allocation3], 1
    %s1320 = scalar_lea.sflag [#allocation3], 1
    %1321 = vsyncpa %s1320, 1
    %1322 = vsyncpa [#allocation6], 1
    %s1323 = scalar_lea.sflag [#allocation6], 1
    %1324 = vsyncpa %s1323, 1
    %1325 = vsyncpa [#allocation9], 1
    %1326 = vsyncpa [#allocation4], 1
    %s1327 = scalar_lea.sflag [#allocation4], 1
    %1328 = vsyncpa %s1327, 1

</llo_original>
